<compile_context>
chip_gen: v6e
topology: v6e:2x2x1
jax: 0.10.0
libtpu: 0.0.40
codegen_flags: <defaults>
</compile_context>

<pallas_src>
import math

import jax
import jax.numpy as jnp
from jax import lax
from jax.experimental import pallas as pl
from jax.experimental.pallas import tpu as pltpu


def _round_up(v, m):
    return ((v + m - 1) // m) * m


def _choose_tiles(B, C, F, itemsize, budget_bytes):
    """Pick (TB, TC, TK) tiles for logits = x(B,F) @ W(C,F).T."""
    # Sublane alignment is dtype-aware: 8 for f32, 16 for bf16, 32 for int8/fp8.
    sub = max(8, 32 // itemsize)

    # Class tile: multiples of 256 fill the 256-wide MXU on v6e/v7x; keep >=2
    # class tiles whenever C allows so both v7x TensorCores get parallel work.
    if C <= 256:
        TC = C
    elif C < 1024:
        TC = 256
    else:
        TC = 512

    # Feature (reduction) tile: full extent when it fits, else a large
    # 128-aligned tile (fewer grid steps, larger DMAs).
    TK = F if F <= 2048 else 2048

    # Batch tile: full batch if the pipelined working set fits the budget, so
    # W streams from HBM exactly once; otherwise fall back to 256-row tiles.
    TB = B

    def footprint(tb, tc, tk):
        ins = 2 * (tb * tk + tc * tk + tc) * itemsize   # double-buffered x, W, bias
        out = tb * tc * 4                               # resident f32 accumulator
        return ins + out

    while footprint(TB, TC, TK) > budget_bytes and TK > 512:
        TK = max(512, (TK // 2 // 128) * 128)
    while footprint(TB, TC, TK) > budget_bytes and TB > 256:
        TB = max(256, _round_up(TB // 2, sub))

    return TB, TC, TK


def _make_linear_kernel(tail):
    """tail = # of valid feature columns in the last (ragged) K tile, 0 if aligned."""

    def kernel(x_ref, w_ref, b_ref, out_ref):
        k = pl.program_id(2)
        nk = pl.num_programs(2)

        @pl.when(k == 0)
        def _init():
            out_ref[...] = jnp.zeros_like(out_ref)

        def accum(xv, wv):
            # x tile (TB, TK) contracted with W tile (TC, TK) -> (TB, TC).
            out_ref[...] += lax.dot_general(
                xv, wv,
                dimension_numbers=(((1,), (1,)), ((), ())),
                preferred_element_type=jnp.float32)

        if tail:
            # Only the last K tile is ragged; zero its tail columns so stale
            # VMEM (possibly NaN bit patterns) never enters the reduction.
            @pl.when(k < nk - 1)
            def _body():
                accum(x_ref[...], w_ref[...])

            @pl.when(k == nk - 1)
            def _ragged():
                tk = x_ref.shape[-1]
                keep = lax.broadcasted_iota(jnp.int32, (1, tk), 1) < tail
                accum(jnp.where(keep, x_ref[...], 0),
                      jnp.where(keep, w_ref[...], 0))
        else:
            accum(x_ref[...], w_ref[...])

        @pl.when(k == nk - 1)
        def _finish():
            out_ref[...] += b_ref[...].astype(jnp.float32)

    return kernel


def _linear_pallas(x, W, b):
    """logits = x @ W.T + b."""
    B, F = x.shape
    C, F2 = W.shape
    assert F == F2 and b.shape == (C,)

    out_dtype = jnp.promote_types(x.dtype, W.dtype)

    # Small-problem bypass: custom-call launch overhead and lane padding dwarf
    # the math; XLA fuses the tiny GEMM far cheaper.
    if C < 128 or F < 128 or B * C * F < (1 << 21):
        return (x @ W.T + b).astype(out_dtype)

    itemsize = jnp.dtype(x.dtype).itemsize
    TB, TC, TK = _choose_tiles(B, C, F, itemsize,
                               budget_bytes=40 * 1024 * 1024)

    grid = (pl.cdiv(B, TB), pl.cdiv(C, TC), pl.cdiv(F, TK))
    tail = F % TK  # ragged feature tail handled in-kernel (no wrapper pad)

    b2 = b.reshape(1, C)

    cost = pl.CostEstimate(
        flops=2 * B * C * F,
        transcendentals=0,
        bytes_accessed=(x.size * x.dtype.itemsize
                        + W.size * W.dtype.itemsize
                        + b.size * b.dtype.itemsize
                        + B * C * 4))

    logits = pl.pallas_call(
        _make_linear_kernel(tail),
        out_shape=jax.ShapeDtypeStruct((B, C), jnp.float32),
        grid_spec=pltpu.PrefetchScalarGridSpec(
            num_scalar_prefetch=0,
            grid=grid,
            in_specs=[
                pl.BlockSpec((TB, TK), lambda i, j, k: (i, k)),   # x
                pl.BlockSpec((TC, TK), lambda i, j, k: (j, k)),   # W (A @ B^T)
                pl.BlockSpec((1, TC), lambda i, j, k: (0, j)),    # bias
            ],
            out_specs=pl.BlockSpec((TB, TC), lambda i, j, k: (i, j)),
        ),
        compiler_params=pltpu.CompilerParams(
            dimension_semantics=("parallel", "parallel", "arbitrary"),
            vmem_limit_bytes=48 * 1024 * 1024),
        cost_estimate=cost,
    )(x, W, b2)

    return logits.astype(out_dtype)


def softmax_layer_forward(x, W, b, label=None):
    """Mirror of SoftMaxLayer.forward.

    x: (B, num_features)
    W: (num_classes, num_features)  == self.fc_l.weight == self.fc_w
    b: (num_classes,)               == self.fc_l.bias
    """
    num_classes = W.shape[0]
    logits = _linear_pallas(x, W, b)

    # torch.ones(num_classes) / torch.ones(1): trivial constants, no kernel.
    theta = jnp.ones((num_classes,), jnp.float32)
    if label is None:
        return logits, theta, x, W
    s = jnp.ones((1,), jnp.float32)
    return logits, theta, s, x, W


if __name__ == "__main__":
    key = jax.random.PRNGKey(0)

    def make_case(k, batch, num_features, num_classes):
        k_x, k_w, k_b = jax.random.split(k, 3)
        bound = 1.0 / math.sqrt(num_features)  # nn.Linear default init range
        x = jax.random.normal(k_x, (batch, num_features), jnp.float32)
        W = jax.random.uniform(k_w, (num_classes, num_features), jnp.float32,
                               -bound, bound)
        b = jax.random.uniform(k_b, (num_classes,), jnp.float32, -bound, bound)
        return x, W, b

    keys = jax.random.split(key, 3)
    cases = [
        # (batch, num_features, num_classes)
        (keys[0], 8, 32, 16),      # tiny module-like shapes -> small-problem bypass
        (keys[1], 200, 320, 384),  # Pallas path: 1 K tile, 2 class tiles (both v7x TCs)
        (keys[2], 64, 2100, 256),  # Pallas path: ragged feature tail -> in-kernel K mask
    ]

    for kk, batch, num_features, num_classes in cases:
        x, W, b = make_case(kk, batch, num_features, num_classes)
        label = jnp.zeros((batch,), jnp.int32)

        # Labeled path (matches forward(input, label)).
        logits, theta, s, x_out, w_out = softmax_layer_forward(x, W, b, label)
        jax.block_until_ready((logits, theta, s, x_out, w_out))

        # Unlabeled path (matches forward(input)).
        logits2, theta2, x_out2, w_out2 = softmax_layer_forward(x, W, b, None)
        jax.block_until_ready((logits2, theta2, x_out2, w_out2))

        ref = x @ W.T + b
        assert jnp.allclose(logits, ref, atol=1e-3, rtol=1e-3), (batch, num_features, num_classes)
        assert jnp.allclose(logits2, ref, atol=1e-3, rtol=1e-3)
        assert theta.shape == (num_classes,) and bool(jnp.all(theta == 1.0))
        assert s.shape == (1,) and bool(jnp.all(s == 1.0))
        assert jnp.array_equal(x_out, x) and jnp.array_equal(w_out, W)

    print("KERNEL_OK")
</pallas_src>

<mosaic_0001>
module attributes {stable_mosaic.version = 11 : i64} {
  func.func @kernel(%arg0: i32, %arg1: i32, %arg2: i32, %arg3: memref<200x320xf32, #tpu.memory_space<vmem>>, %arg4: memref<256x320xf32, #tpu.memory_space<vmem>>, %arg5: memref<1x256xf32, #tpu.memory_space<vmem>>, %arg6: memref<200x256xf32, #tpu.memory_space<vmem>>) attributes {dimension_semantics = [#tpu.dimension_semantics<parallel>, #tpu.dimension_semantics<parallel>, #tpu.dimension_semantics<arbitrary>], iteration_bounds = array<i64: 1, 2, 1>, scalar_prefetch = 0 : i64, scratch_operands = 0 : i64, tpu.core_type = #tpu.core_type<tc>, window_params = [{transform_indices = @transform_0, window_bounds = array<i64: 200, 320>}, {transform_indices = @transform_1, window_bounds = array<i64: 256, 320>}, {transform_indices = @transform_2, window_bounds = array<i64: 1, 256>}, {transform_indices = @transform_3, window_bounds = array<i64: 200, 256>}]} {
    %c0_i32 = arith.constant 0 : i32
    %0 = arith.cmpi eq, %arg2, %c0_i32 : i32
    %1 = arith.extui %0 : i1 to i32
    %c0_i32_0 = arith.constant 0 : i32
    %2 = arith.cmpi ne, %1, %c0_i32_0 : i32
    scf.if %2 {
      %cst_10 = arith.constant 0.000000e+00 : f32
      %12 = vector.broadcast %cst_10 : f32 to vector<200x256xf32>
      %c0_11 = arith.constant 0 : index
      %c0_12 = arith.constant 0 : index
      %13 = vector.load %arg6[%c0_11, %c0_12] : memref<200x256xf32, #tpu.memory_space<vmem>>, vector<200x256xf32>
      tpu.vector_store %arg6[%c0_11, %c0_12], %12 {strides = array<i32>} : memref<200x256xf32, #tpu.memory_space<vmem>>, vector<200x256xf32>,
    } else {
    }
    %c0 = arith.constant 0 : index
    %c0_1 = arith.constant 0 : index
    %3 = vector.load %arg3[%c0, %c0_1] : memref<200x320xf32, #tpu.memory_space<vmem>>, vector<200x320xf32>
    %c0_2 = arith.constant 0 : index
    %c0_3 = arith.constant 0 : index
    %4 = vector.load %arg4[%c0_2, %c0_3] : memref<256x320xf32, #tpu.memory_space<vmem>>, vector<256x320xf32>
    %c0_4 = arith.constant 0 : index
    %c0_5 = arith.constant 0 : index
    %5 = vector.load %arg6[%c0_4, %c0_5] : memref<200x256xf32, #tpu.memory_space<vmem>>, vector<200x256xf32>
    %cst = arith.constant dense<0.000000e+00> : vector<200x256xf32>
    %6 = tpu.matmul %3, %4, %cst {dimension_numbers = #tpu.dot_dimension_numbers<[1], [1], [0], [0], [0, 0, 1, 0], [], []>} : vector<200x320xf32>, vector<256x320xf32>, vector<200x256xf32> -> vector<200x256xf32>
    %7 = arith.addf %5, %6 : vector<200x256xf32>
    %c0_6 = arith.constant 0 : index
    %c0_7 = arith.constant 0 : index
    %8 = vector.load %arg6[%c0_6, %c0_7] : memref<200x256xf32, #tpu.memory_space<vmem>>, vector<200x256xf32>
    tpu.vector_store %arg6[%c0_6, %c0_7], %7 {strides = array<i32>} : memref<200x256xf32, #tpu.memory_space<vmem>>, vector<200x256xf32>,
    %c0_i32_8 = arith.constant 0 : i32
    %9 = arith.cmpi eq, %arg2, %c0_i32_8 : i32
    %10 = arith.extui %9 : i1 to i32
    %c0_i32_9 = arith.constant 0 : i32
    %11 = arith.cmpi ne, %10, %c0_i32_9 : i32
    scf.if %11 {
      %c0_10 = arith.constant 0 : index
      %c0_11 = arith.constant 0 : index
      %12 = vector.load %arg6[%c0_10, %c0_11] : memref<200x256xf32, #tpu.memory_space<vmem>>, vector<200x256xf32>
      %c0_12 = arith.constant 0 : index
      %c0_13 = arith.constant 0 : index
      %13 = vector.load %arg5[%c0_12, %c0_13] : memref<1x256xf32, #tpu.memory_space<vmem>>, vector<1x256xf32>
      %14 = vector.broadcast %13 : vector<1x256xf32> to vector<200x256xf32>
      %15 = arith.addf %12, %14 : vector<200x256xf32>
      %c0_14 = arith.constant 0 : index
      %c0_15 = arith.constant 0 : index
      %16 = vector.load %arg6[%c0_14, %c0_15] : memref<200x256xf32, #tpu.memory_space<vmem>>, vector<200x256xf32>
      tpu.vector_store %arg6[%c0_14, %c0_15], %15 {strides = array<i32>} : memref<200x256xf32, #tpu.memory_space<vmem>>, vector<200x256xf32>,
    } else {
    }
    return
  }
  func.func @transform_0(%arg0: i32, %arg1: i32, %arg2: i32) -> (i32, i32) {
    %c0_i32 = arith.constant 0 : i32
    return %arg0, %arg2 : i32, i32
  }
  func.func @transform_1(%arg0: i32, %arg1: i32, %arg2: i32) -> (i32, i32) {
    %c0_i32 = arith.constant 0 : i32
    return %arg1, %arg2 : i32, i32
  }
  func.func @transform_2(%arg0: i32, %arg1: i32, %arg2: i32) -> (i32, i32) {
    %c0_i32 = arith.constant 0 : i32
    %c0_i32_0 = arith.constant 0 : i32
    return %c0_i32, %arg1 : i32, i32
  }
  func.func @transform_3(%arg0: i32, %arg1: i32, %arg2: i32) -> (i32, i32) {
    %c0_i32 = arith.constant 0 : i32
    return %arg0, %arg1 : i32, i32
  }
}

</mosaic_0001>

<llo_original>
// kernel: tpu_custom_call.1
$region0: #{tpu_custom_call.1}
  #allocation0 [shape = 'u32[]', space=smem, size = 0x4, offset = 0x4, fixed_abs, tag = 'smem constant byte address 0x4 - core index']
  #allocation1 [shape = 'u32[144,128]{1,0:T(1,128)}', space=vmem, size = 0x12000, scoped, tag = 'internal scratch']
  %s0 = inlined_call_operand.vmem [shape: f32[200,320], index: 0, kind: input, shape index: {}]
  %s1 = inlined_call_operand.vmem [shape: f32[384,320], index: 1, kind: input, shape index: {}]
  %s2 = inlined_call_operand.vmem [shape: f32[1,384], index: 2, kind: input, shape index: {}]
  %s3 = inlined_call_operand.hbm [shape: f32[200,384], index: 3, kind: output, shape index: {}]
  %s4 = sld [smem:[#allocation0]]
  $region53: #{tpu_custom_call.1} parent=0
    _
  %s6 = ssub.s32 1, %s4
  %s7 = scalar_select 0, %s6, %s4
  $region1: #{tpu_custom_call.1} parent=0
    #allocation2 [shape = 'u8[409600]{0}', space=vmem, size = 0x64000, scoped, tag = 'output window, operand 0']
    #allocation3 [shape = 's32[2]{0}', space=sflag, size = 0x8, scoped, tag = 'scoped memory for tpu_custom_call.1']
    %8 = vsyncpa [#allocation3], 0
    %s9 = scalar_lea.sflag [#allocation3], 1
    %10 = vsyncpa %s9, 0
    loop: start=0, step=1, limit=4
    $region2: #{tpu_custom_call.1} parent=1 // loop_pre_header
      _
    $region3: #{tpu_custom_call.1} parent=1 // loop_header
      %s12 = sphi 0, %s16
      %p13 = scmp.ge.s32.totalorder %s12, 4
      %s19 = sphi 0, %s38
      %s20 = sphi 0, %s34
      %s21 = sphi 0, %s30
      %s22 = sphi 0, %s19
      %s23 = sphi 0, %s20
      %s24 = sphi 0, %s21
      %s25 = sphi 0, %s22
      %s26 = sphi 0, %s23
      %s27 = sphi 0, %s24
      %s43 = sphi 0, %s45
      %s46 = sphi 0, %s43
      %s47 = sphi 0, %s46
      %s63 = sphi 0, %s47
      %s71 = sphi 0, %s73
      %s74 = sphi 0, %s71
      %s75 = sphi 0, %s74
      %s91 = sphi 0, %s75
      %s97 = sphi 0, %s99
      %s100 = sphi 0, %s97
      %s101 = sphi 0, %s100
      %s117 = sphi 0, %s101
      %s125 = sphi 0, %s127
      %s128 = sphi 0, %s125
      %s129 = sphi 0, %s128
      %s145 = sphi 0, %s129
    $region4: #{tpu_custom_call.1} parent=1 // loop_header_branch
      %15 = sbr.rel (%p13) target = $region8
    $region5: #{tpu_custom_call.1} parent=1 // loop_body
      %s17 = ssub.s32 %s12, 1
      %s18 = ssub.s32 %s12, 2
      %s28 = sadd.s32 1, %s21
      %p29 = scmp.ge.s32.totalorder %s28, 1
      %s30 = scalar_select %p29, 0, %s28
      %s31 = sadd.s32 1, %s20
      %s32 = scalar_select %p29, %s31, %s20
      %p33 = scmp.ge.s32.totalorder %s32, 2
      %s34 = scalar_select %p33, 0, %s32
      %s35 = sadd.s32 1, %s19
      %s36 = scalar_select %p33, %s35, %s19
      %p37 = scmp.ge.s32.totalorder %s36, 1
      %s38 = scalar_select %p37, 0, %s36
      %s39 = ssub.s32 %s19, %s38
      %s40 = ssub.s32 %s21, %s30
      %s41 = sor.u32 %s39, %s40
      %p42 = scmp.eq.s32.totalorder %s41, 0
      %s44 = sadd.s32 %s43, 1
      %s45 = scalar_select %p42, %s43, %s44
      %p48 = pneg %p42
      %p49 = scmp.eq.s32.totalorder %s12, 1
      %p50 = por %p48, %p49
      %p51 = scmp.ne.s32.totalorder %s43, %s46
      %p52 = scmp.eq.s32.totalorder %s12, 0
      %p53 = por %p51, %p52
      %p54 = scmp.ne.s32.totalorder %s43, %s46
      %p55 = scmp.eq.s32.totalorder %s17, 1
      %p56 = por %p54, %p55
      %p57 = scmp.ne.s32.totalorder %s46, %s47
      %p58 = scmp.eq.s32.totalorder %s17, 0
      %p59 = por %p57, %p58
      %p60 = scmp.ne.s32.totalorder %s46, %s47
      %p61 = scmp.eq.s32.totalorder %s18, 1
      %p62 = por %p60, %p61
      %p64 = scmp.ne.s32.totalorder %s47, %s63
      %p65 = scmp.eq.s32.totalorder %s18, 0
      %p66 = por %p64, %p65
      %s67 = ssub.s32 %s20, %s34
      %s68 = ssub.s32 %s21, %s30
      %s69 = sor.u32 %s67, %s68
      %p70 = scmp.eq.s32.totalorder %s69, 0
      %s72 = sadd.s32 %s71, 1
      %s73 = scalar_select %p70, %s71, %s72
      %p76 = pneg %p70
      %p77 = scmp.eq.s32.totalorder %s12, 1
      %p78 = por %p76, %p77
      %p79 = scmp.ne.s32.totalorder %s71, %s74
      %p80 = scmp.eq.s32.totalorder %s12, 0
      %p81 = por %p79, %p80
      %p82 = scmp.ne.s32.totalorder %s71, %s74
      %p83 = scmp.eq.s32.totalorder %s17, 1
      %p84 = por %p82, %p83
      %p85 = scmp.ne.s32.totalorder %s74, %s75
      %p86 = scmp.eq.s32.totalorder %s17, 0
      %p87 = por %p85, %p86
      %p88 = scmp.ne.s32.totalorder %s74, %s75
      %p89 = scmp.eq.s32.totalorder %s18, 1
      %p90 = por %p88, %p89
      %p92 = scmp.ne.s32.totalorder %s75, %s91
      %p93 = scmp.eq.s32.totalorder %s18, 0
      %p94 = por %p92, %p93
      %s95 = ssub.s32 %s20, %s34
      %p96 = scmp.eq.s32.totalorder %s95, 0
      %s98 = sadd.s32 %s97, 1
      %s99 = scalar_select %p96, %s97, %s98
      %p102 = pneg %p96
      %p103 = scmp.eq.s32.totalorder %s12, 1
      %p104 = por %p102, %p103
      %p105 = scmp.ne.s32.totalorder %s97, %s100
      %p106 = scmp.eq.s32.totalorder %s12, 0
      %p107 = por %p105, %p106
      %p108 = scmp.ne.s32.totalorder %s97, %s100
      %p109 = scmp.eq.s32.totalorder %s17, 1
      %p110 = por %p108, %p109
      %p111 = scmp.ne.s32.totalorder %s100, %s101
      %p112 = scmp.eq.s32.totalorder %s17, 0
      %p113 = por %p111, %p112
      %p114 = scmp.ne.s32.totalorder %s100, %s101
      %p115 = scmp.eq.s32.totalorder %s18, 1
      %p116 = por %p114, %p115
      %p118 = scmp.ne.s32.totalorder %s101, %s117
      %p119 = scmp.eq.s32.totalorder %s18, 0
      %p120 = por %p118, %p119
      %s121 = ssub.s32 %s19, %s38
      %s122 = ssub.s32 %s20, %s34
      %s123 = sor.u32 %s121, %s122
      %p124 = scmp.eq.s32.totalorder %s123, 0
      %s126 = sadd.s32 %s125, 1
      %s127 = scalar_select %p124, %s125, %s126
      %p130 = pneg %p124
      %p131 = scmp.eq.s32.totalorder %s12, 1
      %p132 = por %p130, %p131
      %p133 = scmp.ne.s32.totalorder %s125, %s128
      %p134 = scmp.eq.s32.totalorder %s12, 0
      %p135 = por %p133, %p134
      %p136 = scmp.ne.s32.totalorder %s125, %s128
      %p137 = scmp.eq.s32.totalorder %s17, 1
      %p138 = por %p136, %p137
      %p139 = scmp.ne.s32.totalorder %s128, %s129
      %p140 = scmp.eq.s32.totalorder %s17, 0
      %p141 = por %p139, %p140
      %p142 = scmp.ne.s32.totalorder %s128, %s129
      %p143 = scmp.eq.s32.totalorder %s18, 1
      %p144 = por %p142, %p143
      %p146 = scmp.ne.s32.totalorder %s129, %s145
      %p147 = scmp.eq.s32.totalorder %s18, 0
      %p148 = por %p146, %p147
      %p149 = scmp.le.s32.totalorder 1, %s12
      %p150 = scmp.lt.s32.totalorder %s12, 3
      %p151 = pnand %p149, %p150
      %p152 = pneg %p151
      // Predicated region
      $region9: #{tpu_custom_call.1} parent=5 // pred_check
        _
      $region10: #{tpu_custom_call.1} parent=5 // pred_check_branch
        %154 = sbr.rel (%p151) target = $region12
      $region11: #{tpu_custom_call.1} parent=5 // pred_region
        %s155 = ssub.s32 %s12, 1
        // Predicated region
        $region13: #{tpu_custom_call.1} parent=11 // pred_check
          %p156 = pneg %p59
        $region14: #{tpu_custom_call.1} parent=11 // pred_check_branch
          %158 = sbr.rel (%p156) target = $region16
        $region15: #{tpu_custom_call.1} parent=11 // pred_region
          %s159 = smul.u32 25, %s22
          %s160 = smul.u32 3, %s24
          %p161 = scmp.lt.s32.totalorder %s159, 24
          %s162 = scalar_select %p161, %s159, 24
          %p163 = scmp.lt.s32.totalorder %s160, 2
          %s164 = scalar_select %p163, %s160, 2
          %s165 = smul.addr %s162, 3
          %s166 = sadd.s32 %s164, %s165
          %s167 = smul.addr %s166, 8
          %s168 = scalar_lea.vmem %s0, %s167
          %s169 = smul.u32 25, %s22
          %s170 = smul.u32 3, %s24
        $region16: #{tpu_custom_call.1} parent=11 // pred_fallthru
          _
      $region12: #{tpu_custom_call.1} parent=5 // pred_fallthru
        _
      %p171 = scmp.lt.s32.totalorder %s12, 2
      // Predicated region
      $region17: #{tpu_custom_call.1} parent=5 // pred_check
        %p172 = pneg %p171
      $region18: #{tpu_custom_call.1} parent=5 // pred_check_branch
        %174 = sbr.rel (%p172) target = $region20
      $region19: #{tpu_custom_call.1} parent=5 // pred_region
        // Predicated region
        $region21: #{tpu_custom_call.1} parent=19 // pred_check
          %p175 = pneg %p81
        $region22: #{tpu_custom_call.1} parent=19 // pred_check_branch
          %177 = sbr.rel (%p175) target = $region24
        $region23: #{tpu_custom_call.1} parent=19 // pred_region
          %s178 = smul.u32 32, %s20
          %s179 = smul.u32 3, %s21
          %s180 = ssub.s32 48, %s178
          %p181 = scmp.lt.s32.totalorder %s180, 32
          %s182 = scalar_select %p181, %s180, 32
          %s183 = smul.u32 128, %s182
          %s184 = smul.u32 %s183, 3
          %p185 = scmp.lt.s32.totalorder %s178, 47
          %s186 = scalar_select %p185, %s178, 47
          %p187 = scmp.lt.s32.totalorder %s179, 2
          %s188 = scalar_select %p187, %s179, 2
          %s189 = smul.addr %s186, 3
          %s190 = sadd.s32 %s188, %s189
          %s191 = smul.addr %s190, 8
          %s192 = scalar_lea.vmem %s1, %s191
          %s193 = smul.u32 32, %s20
          %s194 = smul.u32 3, %s21
          %s195 = ssub.s32 48, %s193
          %p196 = scmp.lt.s32.totalorder %s195, 32
          %s197 = scalar_select %p196, %s195, 32
          %s198 = smul.u32 128, %s197
          %s199 = smul.u32 %s198, 3
        $region24: #{tpu_custom_call.1} parent=19 // pred_fallthru
          _
        // Predicated region
        $region25: #{tpu_custom_call.1} parent=19 // pred_check
          %p200 = pneg %p107
        $region26: #{tpu_custom_call.1} parent=19 // pred_check_branch
          %202 = sbr.rel (%p200) target = $region28
        $region27: #{tpu_custom_call.1} parent=19 // pred_region
          %s203 = smul.u32 2, %s20
          %s204 = ssub.s32 3, %s203
          %p205 = scmp.lt.s32.totalorder %s204, 2
          %s206 = scalar_select %p205, %s204, 2
          %s207 = smul.u32 16, %s206
          %p208 = scmp.lt.s32.totalorder %s203, 2
          %s209 = scalar_select %p208, %s203, 2
          %s210 = scalar_lea.vmem %s2, %s209
          %s211 = smul.u32 2, %s20
          %s212 = ssub.s32 3, %s211
          %p213 = scmp.lt.s32.totalorder %s212, 2
          %s214 = scalar_select %p213, %s212, 2
          %s215 = smul.u32 16, %s214
        $region28: #{tpu_custom_call.1} parent=19 // pred_fallthru
          _
      $region20: #{tpu_custom_call.1} parent=5 // pred_fallthru
        _
      %p216 = scmp.le.s32.totalorder 1, %s12
      %p217 = scmp.lt.s32.totalorder %s12, 3
      %p218 = pnand %p216, %p217
      %p219 = pneg %p218
      // Predicated region
      $region29: #{tpu_custom_call.1} parent=5 // pred_check
        _
      $region30: #{tpu_custom_call.1} parent=5 // pred_check_branch
        %221 = sbr.rel (%p218) target = $region32
      $region31: #{tpu_custom_call.1} parent=5 // pred_region
        %s222 = ssub.s32 %s12, 1
        %s223 = smul.u32 25, %s22
        %s224 = smul.u32 3, %s24
        %p225 = scmp.lt.s32.totalorder %s223, 24
        %s226 = scalar_select %p225, %s223, 24
        %p227 = scmp.lt.s32.totalorder %s224, 2
        %s228 = scalar_select %p227, %s224, 2
        %s229 = smul.addr %s226, 3
        %s230 = sadd.s32 %s228, %s229
        %s231 = smul.addr %s230, 8
        %s232 = scalar_lea.vmem %s0, %s231
        %p233 = pneg %p59
        %p234 = pneg %p56
        %s235 = smul.u32 32, %s23
        %s236 = smul.u32 3, %s24
        %s237 = ssub.s32 48, %s235
        %p238 = scmp.lt.s32.totalorder %s237, 32
        %s239 = scalar_select %p238, %s237, 32
        %s240 = smul.u32 128, %s239
        %s241 = smul.u32 %s240, 3
        %p242 = scmp.lt.s32.totalorder %s235, 47
        %s243 = scalar_select %p242, %s235, 47
        %p244 = scmp.lt.s32.totalorder %s236, 2
        %s245 = scalar_select %p244, %s236, 2
        %s246 = smul.addr %s243, 3
        %s247 = sadd.s32 %s245, %s246
        %s248 = smul.addr %s247, 8
        %s249 = scalar_lea.vmem %s1, %s248
        %p250 = pneg %p87
        %p251 = pneg %p84
        %s252 = smul.u32 2, %s23
        %s253 = ssub.s32 3, %s252
        %p254 = scmp.lt.s32.totalorder %s253, 2
        %s255 = scalar_select %p254, %s253, 2
        %s256 = smul.u32 16, %s255
        %p257 = scmp.lt.s32.totalorder %s252, 2
        %s258 = scalar_select %p257, %s252, 2
        %s259 = scalar_lea.vmem %s2, %s258
        %p260 = pneg %p113
        %p261 = pneg %p110
        %p262 = pneg %p141
        %p263 = pneg %p138
        %s264 = sand.u32 %s128, 1
        %s265 = scalar_lea.sflag [#allocation3], %s264
        %s266 = sand.u32 %s128, 1
        %s267 = smul.addr %s266, 400
        %s268 = scalar_lea.vmem [#allocation2], %s267
        %s269 = smul.u32 25, %s22
        %s270 = smul.u32 3, %s24
        %p271 = scmp.lt.s32.totalorder %s269, 24
        %s272 = scalar_select %p271, %s269, 24
        %p273 = scmp.lt.s32.totalorder %s270, 2
        %s274 = scalar_select %p273, %s270, 2
        %s275 = smul.addr %s272, 3
        %s276 = sadd.s32 %s274, %s275
        %s277 = smul.addr %s276, 8
        %s278 = scalar_lea.vmem %s0, %s277
        %s279 = smul.u32 25, %s22
        %s280 = smul.u32 3, %s24
        %s281 = smul.u32 32, %s23
        %s282 = smul.u32 3, %s24
        %s283 = ssub.s32 48, %s281
        %p284 = scmp.lt.s32.totalorder %s283, 32
        %s285 = scalar_select %p284, %s283, 32
        %s286 = smul.u32 128, %s285
        %s287 = smul.u32 %s286, 3
        %p288 = scmp.lt.s32.totalorder %s281, 47
        %s289 = scalar_select %p288, %s281, 47
        %p290 = scmp.lt.s32.totalorder %s282, 2
        %s291 = scalar_select %p290, %s282, 2
        %s292 = smul.addr %s289, 3
        %s293 = sadd.s32 %s291, %s292
        %s294 = smul.addr %s293, 8
        %s295 = scalar_lea.vmem %s1, %s294
        %s296 = smul.u32 32, %s23
        %s297 = smul.u32 3, %s24
        %s298 = ssub.s32 48, %s296
        %p299 = scmp.lt.s32.totalorder %s298, 32
        %s300 = scalar_select %p299, %s298, 32
        %s301 = smul.u32 128, %s300
        %s302 = smul.u32 %s301, 3
        %s303 = smul.u32 2, %s23
        %s304 = ssub.s32 3, %s303
        %p305 = scmp.lt.s32.totalorder %s304, 2
        %s306 = scalar_select %p305, %s304, 2
        %s307 = smul.u32 16, %s306
        %p308 = scmp.lt.s32.totalorder %s303, 2
        %s309 = scalar_select %p308, %s303, 2
        %s310 = scalar_lea.vmem %s2, %s309
        %s311 = smul.u32 2, %s23
        %s312 = ssub.s32 3, %s311
        %p313 = scmp.lt.s32.totalorder %s312, 2
        %s314 = scalar_select %p313, %s312, 2
        %s315 = smul.u32 16, %s314
        %s316 = smul.u32 25, %s22
        %s317 = smul.u32 2, %s23
        %s318 = ssub.s32 3, %s317
        %p319 = scmp.lt.s32.totalorder %s318, 2
        %s320 = scalar_select %p319, %s318, 2
        %s321 = smul.u32 3200, %s320
        %p322 = scmp.eq.s32.totalorder %s24, 0
        // Predicated region
        $region33: #{tpu_custom_call.1} parent=31 // pred_check
          %p323 = pneg %p322
        $region34: #{tpu_custom_call.1} parent=31 // pred_check_branch
          %325 = sbr.rel (%p323) target = $region36
        $region35: #{tpu_custom_call.1} parent=31 // pred_region
          %326 = vst [vmem:[%s268] sm:$0xff] 0.0
          %327 = vst [vmem:[%s268 + $0x8] sm:$0xff] 0.0
          %328 = vst [vmem:[%s268 + $0x10] sm:$0xff] 0.0
          %329 = vst [vmem:[%s268 + $0x18] sm:$0xff] 0.0
          %330 = vst [vmem:[%s268 + $0x20] sm:$0xff] 0.0
          %331 = vst [vmem:[%s268 + $0x28] sm:$0xff] 0.0
          %332 = vst [vmem:[%s268 + $0x30] sm:$0xff] 0.0
          %333 = vst [vmem:[%s268 + $0x38] sm:$0xff] 0.0
          %334 = vst [vmem:[%s268 + $0x40] sm:$0xff] 0.0
          %335 = vst [vmem:[%s268 + $0x48] sm:$0xff] 0.0
          %336 = vst [vmem:[%s268 + $0x50] sm:$0xff] 0.0
          %337 = vst [vmem:[%s268 + $0x58] sm:$0xff] 0.0
          %338 = vst [vmem:[%s268 + $0x60] sm:$0xff] 0.0
          %339 = vst [vmem:[%s268 + $0x68] sm:$0xff] 0.0
          %340 = vst [vmem:[%s268 + $0x70] sm:$0xff] 0.0
          %341 = vst [vmem:[%s268 + $0x78] sm:$0xff] 0.0
          %342 = vst [vmem:[%s268 + $0x80] sm:$0xff] 0.0
          %343 = vst [vmem:[%s268 + $0x88] sm:$0xff] 0.0
          %344 = vst [vmem:[%s268 + $0x90] sm:$0xff] 0.0
          %345 = vst [vmem:[%s268 + $0x98] sm:$0xff] 0.0
          %346 = vst [vmem:[%s268 + $0xa0] sm:$0xff] 0.0
          %347 = vst [vmem:[%s268 + $0xa8] sm:$0xff] 0.0
          %348 = vst [vmem:[%s268 + $0xb0] sm:$0xff] 0.0
          %349 = vst [vmem:[%s268 + $0xb8] sm:$0xff] 0.0
          %350 = vst [vmem:[%s268 + $0xc0] sm:$0xff] 0.0
          %351 = vst [vmem:[%s268 + $0xc8] sm:$0xff] 0.0
          %352 = vst [vmem:[%s268 + $0xd0] sm:$0xff] 0.0
          %353 = vst [vmem:[%s268 + $0xd8] sm:$0xff] 0.0
          %354 = vst [vmem:[%s268 + $0xe0] sm:$0xff] 0.0
          %355 = vst [vmem:[%s268 + $0xe8] sm:$0xff] 0.0
          %356 = vst [vmem:[%s268 + $0xf0] sm:$0xff] 0.0
          %357 = vst [vmem:[%s268 + $0xf8] sm:$0xff] 0.0
          %358 = vst [vmem:[%s268 + $0x100] sm:$0xff] 0.0
          %359 = vst [vmem:[%s268 + $0x108] sm:$0xff] 0.0
          %360 = vst [vmem:[%s268 + $0x110] sm:$0xff] 0.0
          %361 = vst [vmem:[%s268 + $0x118] sm:$0xff] 0.0
          %362 = vst [vmem:[%s268 + $0x120] sm:$0xff] 0.0
          %363 = vst [vmem:[%s268 + $0x128] sm:$0xff] 0.0
          %364 = vst [vmem:[%s268 + $0x130] sm:$0xff] 0.0
          %365 = vst [vmem:[%s268 + $0x138] sm:$0xff] 0.0
          %366 = vst [vmem:[%s268 + $0x140] sm:$0xff] 0.0
          %367 = vst [vmem:[%s268 + $0x148] sm:$0xff] 0.0
          %368 = vst [vmem:[%s268 + $0x150] sm:$0xff] 0.0
          %369 = vst [vmem:[%s268 + $0x158] sm:$0xff] 0.0
          %370 = vst [vmem:[%s268 + $0x160] sm:$0xff] 0.0
          %371 = vst [vmem:[%s268 + $0x168] sm:$0xff] 0.0
          %372 = vst [vmem:[%s268 + $0x170] sm:$0xff] 0.0
          %373 = vst [vmem:[%s268 + $0x178] sm:$0xff] 0.0
          %374 = vst [vmem:[%s268 + $0x180] sm:$0xff] 0.0
          %375 = vst [vmem:[%s268 + $0x188] sm:$0xff] 0.0
        $region36: #{tpu_custom_call.1} parent=31 // pred_fallthru
          _
        %v376 = vld [vmem:[%s278] sm:$0xff]
        %v377 = vld [vmem:[%s278 + $0x8] sm:$0xff]
        %v378 = vld [vmem:[%s278 + $0x10] sm:$0xff]
        %v379 = vld [vmem:[%s278 + $0x18] sm:$0xff]
        %v380 = vld [vmem:[%s278 + $0x20] sm:$0xff]
        %v381 = vld [vmem:[%s278 + $0x28] sm:$0xff]
        %v382 = vld [vmem:[%s278 + $0x30] sm:$0xff]
        %v383 = vld [vmem:[%s278 + $0x38] sm:$0xff]
        %v384 = vld [vmem:[%s278 + $0x40] sm:$0xff]
        %v385 = vld [vmem:[%s278 + $0x48] sm:$0xff]
        %v386 = vld [vmem:[%s278 + $0x50] sm:$0xff]
        %v387 = vld [vmem:[%s278 + $0x58] sm:$0xff]
        %v388 = vld [vmem:[%s278 + $0x60] sm:$0xff]
        %v389 = vld [vmem:[%s278 + $0x68] sm:$0xff]
        %v390 = vld [vmem:[%s278 + $0x70] sm:$0xff]
        %v391 = vld [vmem:[%s278 + $0x78] sm:$0xff]
        %v392 = vld [vmem:[%s278 + $0x80] sm:$0xff]
        %v393 = vld [vmem:[%s278 + $0x88] sm:$0xff]
        %v394 = vld [vmem:[%s278 + $0x90] sm:$0xff]
        %v395 = vld [vmem:[%s278 + $0x98] sm:$0xff]
        %v396 = vld [vmem:[%s278 + $0xa0] sm:$0xff]
        %v397 = vld [vmem:[%s278 + $0xa8] sm:$0xff]
        %v398 = vld [vmem:[%s278 + $0xb0] sm:$0xff]
        %v399 = vld [vmem:[%s278 + $0xb8] sm:$0xff]
        %v400 = vld [vmem:[%s278 + $0xc0] sm:$0xff]
        %v401 = vld [vmem:[%s278 + $0xc8] sm:$0xff]
        %v402 = vld [vmem:[%s278 + $0xd0] sm:$0xff]
        %v403 = vld [vmem:[%s278 + $0xd8] sm:$0xff]
        %v404 = vld [vmem:[%s278 + $0xe0] sm:$0xff]
        %v405 = vld [vmem:[%s278 + $0xe8] sm:$0xff]
        %v406 = vld [vmem:[%s278 + $0xf0] sm:$0xff]
        %v407 = vld [vmem:[%s278 + $0xf8] sm:$0xff]
        %v408 = vld [vmem:[%s278 + $0x100] sm:$0xff]
        %v409 = vld [vmem:[%s278 + $0x108] sm:$0xff]
        %v410 = vld [vmem:[%s278 + $0x110] sm:$0xff]
        %v411 = vld [vmem:[%s278 + $0x118] sm:$0xff]
        %v412 = vld [vmem:[%s278 + $0x120] sm:$0xff]
        %v413 = vld [vmem:[%s278 + $0x128] sm:$0xff]
        %v414 = vld [vmem:[%s278 + $0x130] sm:$0xff]
        %v415 = vld [vmem:[%s278 + $0x138] sm:$0xff]
        %v416 = vld [vmem:[%s278 + $0x140] sm:$0xff]
        %v417 = vld [vmem:[%s278 + $0x148] sm:$0xff]
        %v418 = vld [vmem:[%s278 + $0x150] sm:$0xff]
        %v419 = vld [vmem:[%s278 + $0x158] sm:$0xff]
        %v420 = vld [vmem:[%s278 + $0x160] sm:$0xff]
        %v421 = vld [vmem:[%s278 + $0x168] sm:$0xff]
        %v422 = vld [vmem:[%s278 + $0x170] sm:$0xff]
        %v423 = vld [vmem:[%s278 + $0x178] sm:$0xff]
        %v424 = vld [vmem:[%s278 + $0x180] sm:$0xff]
        %v425 = vld [vmem:[%s278 + $0x188] sm:$0xff]
        %v426 = vld [vmem:[%s278 + $0x190] sm:$0xff]
        %v427 = vld [vmem:[%s278 + $0x198] sm:$0xff]
        %v428 = vld [vmem:[%s278 + $0x1a0] sm:$0xff]
        %v429 = vld [vmem:[%s278 + $0x1a8] sm:$0xff]
        %v430 = vld [vmem:[%s278 + $0x1b0] sm:$0xff]
        %v431 = vld [vmem:[%s278 + $0x1b8] sm:$0xff]
        %v432 = vld [vmem:[%s278 + $0x1c0] sm:$0xff]
        %v433 = vld [vmem:[%s278 + $0x1c8] sm:$0xff]
        %v434 = vld [vmem:[%s278 + $0x1d0] sm:$0xff]
        %v435 = vld [vmem:[%s278 + $0x1d8] sm:$0xff]
        %v436 = vld [vmem:[%s278 + $0x1e0] sm:$0xff]
        %v437 = vld [vmem:[%s278 + $0x1e8] sm:$0xff]
        %v438 = vld [vmem:[%s278 + $0x1f0] sm:$0xff]
        %v439 = vld [vmem:[%s278 + $0x1f8] sm:$0xff]
        %v440 = vld [vmem:[%s278 + $0x200] sm:$0xff]
        %v441 = vld [vmem:[%s278 + $0x208] sm:$0xff]
        %v442 = vld [vmem:[%s278 + $0x210] sm:$0xff]
        %v443 = vld [vmem:[%s278 + $0x218] sm:$0xff]
        %v444 = vld [vmem:[%s278 + $0x220] sm:$0xff]
        %v445 = vld [vmem:[%s278 + $0x228] sm:$0xff]
        %v446 = vld [vmem:[%s278 + $0x230] sm:$0xff]
        %v447 = vld [vmem:[%s278 + $0x238] sm:$0xff]
        %v448 = vld [vmem:[%s278 + $0x240] sm:$0xff]
        %v449 = vld [vmem:[%s278 + $0x248] sm:$0xff]
        %v450 = vld [vmem:[%s278 + $0x250] sm:$0xff]
        %v451 = vld [vmem:[%s295] sm:$0xff]
        %v452 = vld [vmem:[%s295 + $0x8] sm:$0xff]
        %v453 = vld [vmem:[%s295 + $0x10] sm:$0xff]
        %v454 = vld [vmem:[%s295 + $0x18] sm:$0xff]
        %v455 = vld [vmem:[%s295 + $0x20] sm:$0xff]
        %v456 = vld [vmem:[%s295 + $0x28] sm:$0xff]
        %v457 = vld [vmem:[%s295 + $0x30] sm:$0xff]
        %v458 = vld [vmem:[%s295 + $0x38] sm:$0xff]
        %v459 = vld [vmem:[%s295 + $0x40] sm:$0xff]
        %v460 = vld [vmem:[%s295 + $0x48] sm:$0xff]
        %v461 = vld [vmem:[%s295 + $0x50] sm:$0xff]
        %v462 = vld [vmem:[%s295 + $0x58] sm:$0xff]
        %v463 = vld [vmem:[%s295 + $0x60] sm:$0xff]
        %v464 = vld [vmem:[%s295 + $0x68] sm:$0xff]
        %v465 = vld [vmem:[%s295 + $0x70] sm:$0xff]
        %v466 = vld [vmem:[%s295 + $0x78] sm:$0xff]
        %v467 = vld [vmem:[%s295 + $0x80] sm:$0xff]
        %v468 = vld [vmem:[%s295 + $0x88] sm:$0xff]
        %v469 = vld [vmem:[%s295 + $0x90] sm:$0xff]
        %v470 = vld [vmem:[%s295 + $0x98] sm:$0xff]
        %v471 = vld [vmem:[%s295 + $0xa0] sm:$0xff]
        %v472 = vld [vmem:[%s295 + $0xa8] sm:$0xff]
        %v473 = vld [vmem:[%s295 + $0xb0] sm:$0xff]
        %v474 = vld [vmem:[%s295 + $0xb8] sm:$0xff]
        %v475 = vld [vmem:[%s295 + $0xc0] sm:$0xff]
        %v476 = vld [vmem:[%s295 + $0xc8] sm:$0xff]
        %v477 = vld [vmem:[%s295 + $0xd0] sm:$0xff]
        %v478 = vld [vmem:[%s295 + $0xd8] sm:$0xff]
        %v479 = vld [vmem:[%s295 + $0xe0] sm:$0xff]
        %v480 = vld [vmem:[%s295 + $0xe8] sm:$0xff]
        %v481 = vld [vmem:[%s295 + $0xf0] sm:$0xff]
        %v482 = vld [vmem:[%s295 + $0xf8] sm:$0xff]
        %v483 = vld [vmem:[%s295 + $0x100] sm:$0xff]
        %v484 = vld [vmem:[%s295 + $0x108] sm:$0xff]
        %v485 = vld [vmem:[%s295 + $0x110] sm:$0xff]
        %v486 = vld [vmem:[%s295 + $0x118] sm:$0xff]
        %v487 = vld [vmem:[%s295 + $0x120] sm:$0xff]
        %v488 = vld [vmem:[%s295 + $0x128] sm:$0xff]
        %v489 = vld [vmem:[%s295 + $0x130] sm:$0xff]
        %v490 = vld [vmem:[%s295 + $0x138] sm:$0xff]
        %v491 = vld [vmem:[%s295 + $0x140] sm:$0xff]
        %v492 = vld [vmem:[%s295 + $0x148] sm:$0xff]
        %v493 = vld [vmem:[%s295 + $0x150] sm:$0xff]
        %v494 = vld [vmem:[%s295 + $0x158] sm:$0xff]
        %v495 = vld [vmem:[%s295 + $0x160] sm:$0xff]
        %v496 = vld [vmem:[%s295 + $0x168] sm:$0xff]
        %v497 = vld [vmem:[%s295 + $0x170] sm:$0xff]
        %v498 = vld [vmem:[%s295 + $0x178] sm:$0xff]
        %v499 = vld [vmem:[%s295 + $0x180] sm:$0xff]
        %v500 = vld [vmem:[%s295 + $0x188] sm:$0xff]
        %v501 = vld [vmem:[%s295 + $0x190] sm:$0xff]
        %v502 = vld [vmem:[%s295 + $0x198] sm:$0xff]
        %v503 = vld [vmem:[%s295 + $0x1a0] sm:$0xff]
        %v504 = vld [vmem:[%s295 + $0x1a8] sm:$0xff]
        %v505 = vld [vmem:[%s295 + $0x1b0] sm:$0xff]
        %v506 = vld [vmem:[%s295 + $0x1b8] sm:$0xff]
        %v507 = vld [vmem:[%s295 + $0x1c0] sm:$0xff]
        %v508 = vld [vmem:[%s295 + $0x1c8] sm:$0xff]
        %v509 = vld [vmem:[%s295 + $0x1d0] sm:$0xff]
        %v510 = vld [vmem:[%s295 + $0x1d8] sm:$0xff]
        %v511 = vld [vmem:[%s295 + $0x1e0] sm:$0xff]
        %v512 = vld [vmem:[%s295 + $0x1e8] sm:$0xff]
        %v513 = vld [vmem:[%s295 + $0x1f0] sm:$0xff]
        %v514 = vld [vmem:[%s295 + $0x1f8] sm:$0xff]
        %v515 = vld [vmem:[%s295 + $0x200] sm:$0xff]
        %v516 = vld [vmem:[%s295 + $0x208] sm:$0xff]
        %v517 = vld [vmem:[%s295 + $0x210] sm:$0xff]
        %v518 = vld [vmem:[%s295 + $0x218] sm:$0xff]
        %v519 = vld [vmem:[%s295 + $0x220] sm:$0xff]
        %v520 = vld [vmem:[%s295 + $0x228] sm:$0xff]
        %v521 = vld [vmem:[%s295 + $0x230] sm:$0xff]
        %v522 = vld [vmem:[%s295 + $0x238] sm:$0xff]
        %v523 = vld [vmem:[%s295 + $0x240] sm:$0xff]
        %v524 = vld [vmem:[%s295 + $0x248] sm:$0xff]
        %v525 = vld [vmem:[%s295 + $0x250] sm:$0xff]
        %v526 = vld [vmem:[%s295 + $0x258] sm:$0xff]
        %v527 = vld [vmem:[%s295 + $0x260] sm:$0xff]
        %v528 = vld [vmem:[%s295 + $0x268] sm:$0xff]
        %v529 = vld [vmem:[%s295 + $0x270] sm:$0xff]
        %v530 = vld [vmem:[%s295 + $0x278] sm:$0xff]
        %v531 = vld [vmem:[%s295 + $0x280] sm:$0xff]
        %v532 = vld [vmem:[%s295 + $0x288] sm:$0xff]
        %v533 = vld [vmem:[%s295 + $0x290] sm:$0xff]
        %v534 = vld [vmem:[%s295 + $0x298] sm:$0xff]
        %v535 = vld [vmem:[%s295 + $0x2a0] sm:$0xff]
        %v536 = vld [vmem:[%s295 + $0x2a8] sm:$0xff]
        %v537 = vld [vmem:[%s295 + $0x2b0] sm:$0xff]
        %v538 = vld [vmem:[%s295 + $0x2b8] sm:$0xff]
        %v539 = vld [vmem:[%s295 + $0x2c0] sm:$0xff]
        %v540 = vld [vmem:[%s295 + $0x2c8] sm:$0xff]
        %v541 = vld [vmem:[%s295 + $0x2d0] sm:$0xff]
        %v542 = vld [vmem:[%s295 + $0x2d8] sm:$0xff]
        %v543 = vld [vmem:[%s295 + $0x2e0] sm:$0xff]
        %v544 = vld [vmem:[%s295 + $0x2e8] sm:$0xff]
        %v545 = vld [vmem:[%s295 + $0x2f0] sm:$0xff]
        %v546 = vld [vmem:[%s295 + $0x2f8] sm:$0xff]
        %v547 = vld [vmem:[%s268] sm:$0xff]
        %v548 = vld [vmem:[%s268 + $0x8] sm:$0xff]
        %v549 = vld [vmem:[%s268 + $0x10] sm:$0xff]
        %v550 = vld [vmem:[%s268 + $0x18] sm:$0xff]
        %v551 = vld [vmem:[%s268 + $0x20] sm:$0xff]
        %v552 = vld [vmem:[%s268 + $0x28] sm:$0xff]
        %v553 = vld [vmem:[%s268 + $0x30] sm:$0xff]
        %v554 = vld [vmem:[%s268 + $0x38] sm:$0xff]
        %v555 = vld [vmem:[%s268 + $0x40] sm:$0xff]
        %v556 = vld [vmem:[%s268 + $0x48] sm:$0xff]
        %v557 = vld [vmem:[%s268 + $0x50] sm:$0xff]
        %v558 = vld [vmem:[%s268 + $0x58] sm:$0xff]
        %v559 = vld [vmem:[%s268 + $0x60] sm:$0xff]
        %v560 = vld [vmem:[%s268 + $0x68] sm:$0xff]
        %v561 = vld [vmem:[%s268 + $0x70] sm:$0xff]
        %v562 = vld [vmem:[%s268 + $0x78] sm:$0xff]
        %v563 = vld [vmem:[%s268 + $0x80] sm:$0xff]
        %v564 = vld [vmem:[%s268 + $0x88] sm:$0xff]
        %v565 = vld [vmem:[%s268 + $0x90] sm:$0xff]
        %v566 = vld [vmem:[%s268 + $0x98] sm:$0xff]
        %v567 = vld [vmem:[%s268 + $0xa0] sm:$0xff]
        %v568 = vld [vmem:[%s268 + $0xa8] sm:$0xff]
        %v569 = vld [vmem:[%s268 + $0xb0] sm:$0xff]
        %v570 = vld [vmem:[%s268 + $0xb8] sm:$0xff]
        %v571 = vld [vmem:[%s268 + $0xc0] sm:$0xff]
        %v572 = vld [vmem:[%s268 + $0xc8] sm:$0xff]
        %v573 = vld [vmem:[%s268 + $0xd0] sm:$0xff]
        %v574 = vld [vmem:[%s268 + $0xd8] sm:$0xff]
        %v575 = vld [vmem:[%s268 + $0xe0] sm:$0xff]
        %v576 = vld [vmem:[%s268 + $0xe8] sm:$0xff]
        %v577 = vld [vmem:[%s268 + $0xf0] sm:$0xff]
        %v578 = vld [vmem:[%s268 + $0xf8] sm:$0xff]
        %v579 = vld [vmem:[%s268 + $0x100] sm:$0xff]
        %v580 = vld [vmem:[%s268 + $0x108] sm:$0xff]
        %v581 = vld [vmem:[%s268 + $0x110] sm:$0xff]
        %v582 = vld [vmem:[%s268 + $0x118] sm:$0xff]
        %v583 = vld [vmem:[%s268 + $0x120] sm:$0xff]
        %v584 = vld [vmem:[%s268 + $0x128] sm:$0xff]
        %v585 = vld [vmem:[%s268 + $0x130] sm:$0xff]
        %v586 = vld [vmem:[%s268 + $0x138] sm:$0xff]
        %v587 = vld [vmem:[%s268 + $0x140] sm:$0xff]
        %v588 = vld [vmem:[%s268 + $0x148] sm:$0xff]
        %v589 = vld [vmem:[%s268 + $0x150] sm:$0xff]
        %v590 = vld [vmem:[%s268 + $0x158] sm:$0xff]
        %v591 = vld [vmem:[%s268 + $0x160] sm:$0xff]
        %v592 = vld [vmem:[%s268 + $0x168] sm:$0xff]
        %v593 = vld [vmem:[%s268 + $0x170] sm:$0xff]
        %v594 = vld [vmem:[%s268 + $0x178] sm:$0xff]
        %v595 = vld [vmem:[%s268 + $0x180] sm:$0xff]
        %v596 = vld [vmem:[%s268 + $0x188] sm:$0xff]
        %vm597 = vcmask 523264
        %v599 = vsel %vm597, %v378, 0
        %v602 = vsel %vm597, %v381, 0
        %v605 = vsel %vm597, %v384, 0
        %v608 = vsel %vm597, %v387, 0
        %v611 = vsel %vm597, %v390, 0
        %v614 = vsel %vm597, %v393, 0
        %v617 = vsel %vm597, %v396, 0
        %v620 = vsel %vm597, %v399, 0
        %v623 = vsel %vm597, %v402, 0
        %v626 = vsel %vm597, %v405, 0
        %v629 = vsel %vm597, %v408, 0
        %v632 = vsel %vm597, %v411, 0
        %v635 = vsel %vm597, %v414, 0
        %v638 = vsel %vm597, %v417, 0
        %v641 = vsel %vm597, %v420, 0
        %v644 = vsel %vm597, %v423, 0
        %v647 = vsel %vm597, %v426, 0
        %v650 = vsel %vm597, %v429, 0
        %v653 = vsel %vm597, %v432, 0
        %v656 = vsel %vm597, %v435, 0
        %v659 = vsel %vm597, %v438, 0
        %v662 = vsel %vm597, %v441, 0
        %v665 = vsel %vm597, %v444, 0
        %v668 = vsel %vm597, %v447, 0
        %v671 = vsel %vm597, %v450, 0
        %v674 = vsel %vm597, %v453, 0
        %v677 = vsel %vm597, %v456, 0
        %v680 = vsel %vm597, %v459, 0
        %v683 = vsel %vm597, %v462, 0
        %v686 = vsel %vm597, %v465, 0
        %v689 = vsel %vm597, %v468, 0
        %v692 = vsel %vm597, %v471, 0
        %v695 = vsel %vm597, %v474, 0
        %v698 = vsel %vm597, %v477, 0
        %v701 = vsel %vm597, %v480, 0
        %v704 = vsel %vm597, %v483, 0
        %v707 = vsel %vm597, %v486, 0
        %v710 = vsel %vm597, %v489, 0
        %v713 = vsel %vm597, %v492, 0
        %v716 = vsel %vm597, %v495, 0
        %v719 = vsel %vm597, %v498, 0
        %v722 = vsel %vm597, %v501, 0
        %v725 = vsel %vm597, %v504, 0
        %v728 = vsel %vm597, %v507, 0
        %v731 = vsel %vm597, %v510, 0
        %v734 = vsel %vm597, %v513, 0
        %v737 = vsel %vm597, %v516, 0
        %v740 = vsel %vm597, %v519, 0
        %v743 = vsel %vm597, %v522, 0
        %v746 = vsel %vm597, %v525, 0
        %v749 = vsel %vm597, %v528, 0
        %v752 = vsel %vm597, %v531, 0
        %v755 = vsel %vm597, %v534, 0
        %v758 = vsel %vm597, %v537, 0
        %v761 = vsel %vm597, %v540, 0
        %v764 = vsel %vm597, %v543, 0
        %v767 = vsel %vm597, %v546, 0
        %769 = vmatprep.subr.mxu0 %v497
        %770 = vmatpush1.xpose.msra.mxu0 %v496
        %771 = vmatprep.subr.mxu0 %v494
        %772 = vmatpush1.xpose.msra.mxu0 %v493
        %773 = vmatprep.subr.mxu0 %v491
        %774 = vmatpush1.xpose.msra.mxu0 %v490
        %775 = vmatprep.subr.mxu0 %v488
        %776 = vmatpush1.xpose.msra.mxu0 %v487
        %777 = vmatprep.subr.mxu0 %v485
        %778 = vmatpush1.xpose.msra.mxu0 %v484
        %779 = vmatprep.subr.mxu0 %v482
        %780 = vmatpush1.xpose.msra.mxu0 %v481
        %781 = vmatprep.subr.mxu0 %v479
        %782 = vmatpush1.xpose.msra.mxu0 %v478
        %783 = vmatprep.subr.mxu0 %v476
        %784 = vmatpush1.xpose.msra.mxu0 %v475
        %785 = vmatprep.subr.mxu0 %v473
        %786 = vmatpush1.xpose.msra.mxu0 %v472
        %787 = vmatprep.subr.mxu0 %v470
        %788 = vmatpush1.xpose.msra.mxu0 %v469
        %789 = vmatprep.subr.mxu0 %v467
        %790 = vmatpush1.xpose.msra.mxu0 %v466
        %791 = vmatprep.subr.mxu0 %v464
        %792 = vmatpush1.xpose.msra.mxu0 %v463
        %793 = vmatprep.subr.mxu0 %v461
        %794 = vmatpush1.xpose.msra.mxu0 %v460
        %795 = vmatprep.subr.mxu0 %v458
        %796 = vmatpush1.xpose.msra.mxu0 %v457
        %797 = vmatprep.subr.mxu0 %v455
        %798 = vmatpush1.xpose.msra.mxu0 %v454
        %799 = vmatprep.subr.mxu0 %v452
        %800 = vmatpush1.xpose.msra.mxu0 %v451
        %801 = vmatprep.subr.mxu0 %v545
        %802 = vmatpush2.xpose.msra.mxu0 %v544
        %803 = vmatprep.subr.mxu0 %v542
        %804 = vmatpush2.xpose.msra.mxu0 %v541
        %805 = vmatprep.subr.mxu0 %v539
        %806 = vmatpush2.xpose.msra.mxu0 %v538
        %807 = vmatprep.subr.mxu0 %v536
        %808 = vmatpush2.xpose.msra.mxu0 %v535
        %809 = vmatprep.subr.mxu0 %v533
        %810 = vmatpush2.xpose.msra.mxu0 %v532
        %811 = vmatprep.subr.mxu0 %v530
        %812 = vmatpush2.xpose.msra.mxu0 %v529
        %813 = vmatprep.subr.mxu0 %v527
        %814 = vmatpush2.xpose.msra.mxu0 %v526
        %815 = vmatprep.subr.mxu0 %v524
        %816 = vmatpush2.xpose.msra.mxu0 %v523
        %817 = vmatprep.subr.mxu0 %v521
        %818 = vmatpush2.xpose.msra.mxu0 %v520
        %819 = vmatprep.subr.mxu0 %v518
        %820 = vmatpush2.xpose.msra.mxu0 %v517
        %821 = vmatprep.subr.mxu0 %v515
        %822 = vmatpush2.xpose.msra.mxu0 %v514
        %823 = vmatprep.subr.mxu0 %v512
        %824 = vmatpush2.xpose.msra.mxu0 %v511
        %825 = vmatprep.subr.mxu0 %v509
        %826 = vmatpush2.xpose.msra.mxu0 %v508
        %827 = vmatprep.subr.mxu0 %v506
        %828 = vmatpush2.xpose.msra.mxu0 %v505
        %829 = vmatprep.subr.mxu0 %v503
        %830 = vmatpush2.xpose.msra.mxu0 %v502
        %831 = vmatprep.subr.mxu0 %v500
        %832 = vmatpush2.xpose.msra.mxu0 %v499
        %833 = vmatprep.mubr.f32.mxu0 %v377
        %834 = vmatmul.mubr.f32.gmra.mxu0 %v376
        %v835 = vpop.f32.mrf.mxu0
        %v836 = vadd.f32 0.0, %v835
        %v837 = vpop.f32.mrf.mxu0
        %v838 = vadd.f32 0.0, %v837
        %839 = vmatprep.mubr.f32.mxu0 %v380
        %840 = vmatmul.mubr.f32.gmra.mxu0 %v379
        %v841 = vpop.f32.mrf.mxu0
        %v842 = vadd.f32 0.0, %v841
        %v843 = vpop.f32.mrf.mxu0
        %v844 = vadd.f32 0.0, %v843
        %845 = vmatprep.mubr.f32.mxu0 %v383
        %846 = vmatmul.mubr.f32.gmra.mxu0 %v382
        %v847 = vpop.f32.mrf.mxu0
        %v848 = vadd.f32 0.0, %v847
        %v849 = vpop.f32.mrf.mxu0
        %v850 = vadd.f32 0.0, %v849
        %851 = vmatprep.mubr.f32.mxu0 %v386
        %852 = vmatmul.mubr.f32.gmra.mxu0 %v385
        %v853 = vpop.f32.mrf.mxu0
        %v854 = vadd.f32 0.0, %v853
        %v855 = vpop.f32.mrf.mxu0
        %v856 = vadd.f32 0.0, %v855
        %857 = vmatprep.mubr.f32.mxu0 %v389
        %858 = vmatmul.mubr.f32.gmra.mxu0 %v388
        %v859 = vpop.f32.mrf.mxu0
        %v860 = vadd.f32 0.0, %v859
        %v861 = vpop.f32.mrf.mxu0
        %v862 = vadd.f32 0.0, %v861
        %863 = vmatprep.mubr.f32.mxu0 %v392
        %864 = vmatmul.mubr.f32.gmra.mxu0 %v391
        %v865 = vpop.f32.mrf.mxu0
        %v866 = vadd.f32 0.0, %v865
        %v867 = vpop.f32.mrf.mxu0
        %v868 = vadd.f32 0.0, %v867
        %869 = vmatprep.mubr.f32.mxu0 %v395
        %870 = vmatmul.mubr.f32.gmra.mxu0 %v394
        %v871 = vpop.f32.mrf.mxu0
        %v872 = vadd.f32 0.0, %v871
        %v873 = vpop.f32.mrf.mxu0
        %v874 = vadd.f32 0.0, %v873
        %875 = vmatprep.mubr.f32.mxu0 %v398
        %876 = vmatmul.mubr.f32.gmra.mxu0 %v397
        %v877 = vpop.f32.mrf.mxu0
        %v878 = vadd.f32 0.0, %v877
        %v879 = vpop.f32.mrf.mxu0
        %v880 = vadd.f32 0.0, %v879
        %881 = vmatprep.mubr.f32.mxu0 %v401
        %882 = vmatmul.mubr.f32.gmra.mxu0 %v400
        %v883 = vpop.f32.mrf.mxu0
        %v884 = vadd.f32 0.0, %v883
        %v885 = vpop.f32.mrf.mxu0
        %v886 = vadd.f32 0.0, %v885
        %887 = vmatprep.mubr.f32.mxu0 %v404
        %888 = vmatmul.mubr.f32.gmra.mxu0 %v403
        %v889 = vpop.f32.mrf.mxu0
        %v890 = vadd.f32 0.0, %v889
        %v891 = vpop.f32.mrf.mxu0
        %v892 = vadd.f32 0.0, %v891
        %893 = vmatprep.mubr.f32.mxu0 %v407
        %894 = vmatmul.mubr.f32.gmra.mxu0 %v406
        %v895 = vpop.f32.mrf.mxu0
        %v896 = vadd.f32 0.0, %v895
        %v897 = vpop.f32.mrf.mxu0
        %v898 = vadd.f32 0.0, %v897
        %899 = vmatprep.mubr.f32.mxu0 %v410
        %900 = vmatmul.mubr.f32.gmra.mxu0 %v409
        %v901 = vpop.f32.mrf.mxu0
        %v902 = vadd.f32 0.0, %v901
        %v903 = vpop.f32.mrf.mxu0
        %v904 = vadd.f32 0.0, %v903
        %905 = vmatprep.mubr.f32.mxu0 %v413
        %906 = vmatmul.mubr.f32.gmra.mxu0 %v412
        %v907 = vpop.f32.mrf.mxu0
        %v908 = vadd.f32 0.0, %v907
        %v909 = vpop.f32.mrf.mxu0
        %v910 = vadd.f32 0.0, %v909
        %911 = vmatprep.mubr.f32.mxu0 %v416
        %912 = vmatmul.mubr.f32.gmra.mxu0 %v415
        %v913 = vpop.f32.mrf.mxu0
        %v914 = vadd.f32 0.0, %v913
        %v915 = vpop.f32.mrf.mxu0
        %v916 = vadd.f32 0.0, %v915
        %917 = vmatprep.mubr.f32.mxu0 %v419
        %918 = vmatmul.mubr.f32.gmra.mxu0 %v418
        %v919 = vpop.f32.mrf.mxu0
        %v920 = vadd.f32 0.0, %v919
        %v921 = vpop.f32.mrf.mxu0
        %v922 = vadd.f32 0.0, %v921
        %923 = vmatprep.mubr.f32.mxu0 %v422
        %924 = vmatmul.mubr.f32.gmra.mxu0 %v421
        %v925 = vpop.f32.mrf.mxu0
        %v926 = vadd.f32 0.0, %v925
        %v927 = vpop.f32.mrf.mxu0
        %v928 = vadd.f32 0.0, %v927
        %929 = vmatprep.mubr.f32.mxu0 %v425
        %930 = vmatmul.mubr.f32.gmra.mxu0 %v424
        %v931 = vpop.f32.mrf.mxu0
        %v932 = vadd.f32 0.0, %v931
        %v933 = vpop.f32.mrf.mxu0
        %v934 = vadd.f32 0.0, %v933
        %935 = vmatprep.mubr.f32.mxu0 %v428
        %936 = vmatmul.mubr.f32.gmra.mxu0 %v427
        %v937 = vpop.f32.mrf.mxu0
        %v938 = vadd.f32 0.0, %v937
        %v939 = vpop.f32.mrf.mxu0
        %v940 = vadd.f32 0.0, %v939
        %941 = vmatprep.mubr.f32.mxu0 %v431
        %942 = vmatmul.mubr.f32.gmra.mxu0 %v430
        %v943 = vpop.f32.mrf.mxu0
        %v944 = vadd.f32 0.0, %v943
        %v945 = vpop.f32.mrf.mxu0
        %v946 = vadd.f32 0.0, %v945
        %947 = vmatprep.mubr.f32.mxu0 %v434
        %948 = vmatmul.mubr.f32.gmra.mxu0 %v433
        %v949 = vpop.f32.mrf.mxu0
        %v950 = vadd.f32 0.0, %v949
        %v951 = vpop.f32.mrf.mxu0
        %v952 = vadd.f32 0.0, %v951
        %953 = vmatprep.mubr.f32.mxu0 %v437
        %954 = vmatmul.mubr.f32.gmra.mxu0 %v436
        %v955 = vpop.f32.mrf.mxu0
        %v956 = vadd.f32 0.0, %v955
        %v957 = vpop.f32.mrf.mxu0
        %v958 = vadd.f32 0.0, %v957
        %959 = vmatprep.mubr.f32.mxu0 %v440
        %960 = vmatmul.mubr.f32.gmra.mxu0 %v439
        %v961 = vpop.f32.mrf.mxu0
        %v962 = vadd.f32 0.0, %v961
        %v963 = vpop.f32.mrf.mxu0
        %v964 = vadd.f32 0.0, %v963
        %965 = vmatprep.mubr.f32.mxu0 %v443
        %966 = vmatmul.mubr.f32.gmra.mxu0 %v442
        %v967 = vpop.f32.mrf.mxu0
        %v968 = vadd.f32 0.0, %v967
        %v969 = vpop.f32.mrf.mxu0
        %v970 = vadd.f32 0.0, %v969
        %971 = vmatprep.mubr.f32.mxu0 %v446
        %972 = vmatmul.mubr.f32.gmra.mxu0 %v445
        %v973 = vpop.f32.mrf.mxu0
        %v974 = vadd.f32 0.0, %v973
        %v975 = vpop.f32.mrf.mxu0
        %v976 = vadd.f32 0.0, %v975
        %977 = vmatprep.mubr.f32.mxu0 %v449
        %978 = vmatmul.mubr.f32.gmra.mxu0 %v448
        %v979 = vpop.f32.mrf.mxu0
        %v980 = vadd.f32 0.0, %v979
        %v981 = vpop.f32.mrf.mxu0
        %v982 = vadd.f32 0.0, %v981
        %983 = vdwg.mxu0
        %984 = vmatprep.subr.mxu0 0.0
        %985 = vmatpush1.xpose.msra.mxu0 %v719
        %986 = vmatprep.subr.mxu0 0.0
        %987 = vmatpush1.xpose.msra.mxu0 %v716
        %988 = vmatprep.subr.mxu0 0.0
        %989 = vmatpush1.xpose.msra.mxu0 %v713
        %990 = vmatprep.subr.mxu0 0.0
        %991 = vmatpush1.xpose.msra.mxu0 %v710
        %992 = vmatprep.subr.mxu0 0.0
        %993 = vmatpush1.xpose.msra.mxu0 %v707
        %994 = vmatprep.subr.mxu0 0.0
        %995 = vmatpush1.xpose.msra.mxu0 %v704
        %996 = vmatprep.subr.mxu0 0.0
        %997 = vmatpush1.xpose.msra.mxu0 %v701
        %998 = vmatprep.subr.mxu0 0.0
        %999 = vmatpush1.xpose.msra.mxu0 %v698
        %1000 = vmatprep.subr.mxu0 0.0
        %1001 = vmatpush1.xpose.msra.mxu0 %v695
        %1002 = vmatprep.subr.mxu0 0.0
        %1003 = vmatpush1.xpose.msra.mxu0 %v692
        %1004 = vmatprep.subr.mxu0 0.0
        %1005 = vmatpush1.xpose.msra.mxu0 %v689
        %1006 = vmatprep.subr.mxu0 0.0
        %1007 = vmatpush1.xpose.msra.mxu0 %v686
        %1008 = vmatprep.subr.mxu0 0.0
        %1009 = vmatpush1.xpose.msra.mxu0 %v683
        %1010 = vmatprep.subr.mxu0 0.0
        %1011 = vmatpush1.xpose.msra.mxu0 %v680
        %1012 = vmatprep.subr.mxu0 0.0
        %1013 = vmatpush1.xpose.msra.mxu0 %v677
        %1014 = vmatprep.subr.mxu0 0.0
        %1015 = vmatpush1.xpose.msra.mxu0 %v674
        %1016 = vmatprep.subr.mxu0 0.0
        %1017 = vmatpush2.xpose.msra.mxu0 %v767
        %1018 = vmatprep.subr.mxu0 0.0
        %1019 = vmatpush2.xpose.msra.mxu0 %v764
        %1020 = vmatprep.subr.mxu0 0.0
        %1021 = vmatpush2.xpose.msra.mxu0 %v761
        %1022 = vmatprep.subr.mxu0 0.0
        %1023 = vmatpush2.xpose.msra.mxu0 %v758
        %1024 = vmatprep.subr.mxu0 0.0
        %1025 = vmatpush2.xpose.msra.mxu0 %v755
        %1026 = vmatprep.subr.mxu0 0.0
        %1027 = vmatpush2.xpose.msra.mxu0 %v752
        %1028 = vmatprep.subr.mxu0 0.0
        %1029 = vmatpush2.xpose.msra.mxu0 %v749
        %1030 = vmatprep.subr.mxu0 0.0
        %1031 = vmatpush2.xpose.msra.mxu0 %v746
        %1032 = vmatprep.subr.mxu0 0.0
        %1033 = vmatpush2.xpose.msra.mxu0 %v743
        %1034 = vmatprep.subr.mxu0 0.0
        %1035 = vmatpush2.xpose.msra.mxu0 %v740
        %1036 = vmatprep.subr.mxu0 0.0
        %1037 = vmatpush2.xpose.msra.mxu0 %v737
        %1038 = vmatprep.subr.mxu0 0.0
        %1039 = vmatpush2.xpose.msra.mxu0 %v734
        %1040 = vmatprep.subr.mxu0 0.0
        %1041 = vmatpush2.xpose.msra.mxu0 %v731
        %1042 = vmatprep.subr.mxu0 0.0
        %1043 = vmatpush2.xpose.msra.mxu0 %v728
        %1044 = vmatprep.subr.mxu0 0.0
        %1045 = vmatpush2.xpose.msra.mxu0 %v725
        %1046 = vmatprep.subr.mxu0 0.0
        %1047 = vmatpush2.xpose.msra.mxu0 %v722
        %1048 = vmatprep.mubr.f32.mxu0 0.0
        %1049 = vmatmul.mubr.f32.gmra.mxu0 %v599
        %v1050 = vpop.f32.mrf.mxu0
        %v1051 = vadd.f32 %v836, %v1050
        %v1052 = vpop.f32.mrf.mxu0
        %v1053 = vadd.f32 %v838, %v1052
        %1054 = vmatprep.mubr.f32.mxu0 0.0
        %1055 = vmatmul.mubr.f32.gmra.mxu0 %v602
        %v1056 = vpop.f32.mrf.mxu0
        %v1057 = vadd.f32 %v842, %v1056
        %v1058 = vpop.f32.mrf.mxu0
        %v1059 = vadd.f32 %v844, %v1058
        %1060 = vmatprep.mubr.f32.mxu0 0.0
        %1061 = vmatmul.mubr.f32.gmra.mxu0 %v605
        %v1062 = vpop.f32.mrf.mxu0
        %v1063 = vadd.f32 %v848, %v1062
        %v1064 = vpop.f32.mrf.mxu0
        %v1065 = vadd.f32 %v850, %v1064
        %1066 = vmatprep.mubr.f32.mxu0 0.0
        %1067 = vmatmul.mubr.f32.gmra.mxu0 %v608
        %v1068 = vpop.f32.mrf.mxu0
        %v1069 = vadd.f32 %v854, %v1068
        %v1070 = vpop.f32.mrf.mxu0
        %v1071 = vadd.f32 %v856, %v1070
        %1072 = vmatprep.mubr.f32.mxu0 0.0
        %1073 = vmatmul.mubr.f32.gmra.mxu0 %v611
        %v1074 = vpop.f32.mrf.mxu0
        %v1075 = vadd.f32 %v860, %v1074
        %v1076 = vpop.f32.mrf.mxu0
        %v1077 = vadd.f32 %v862, %v1076
        %1078 = vmatprep.mubr.f32.mxu0 0.0
        %1079 = vmatmul.mubr.f32.gmra.mxu0 %v614
        %v1080 = vpop.f32.mrf.mxu0
        %v1081 = vadd.f32 %v866, %v1080
        %v1082 = vpop.f32.mrf.mxu0
        %v1083 = vadd.f32 %v868, %v1082
        %1084 = vmatprep.mubr.f32.mxu0 0.0
        %1085 = vmatmul.mubr.f32.gmra.mxu0 %v617
        %v1086 = vpop.f32.mrf.mxu0
        %v1087 = vadd.f32 %v872, %v1086
        %v1088 = vpop.f32.mrf.mxu0
        %v1089 = vadd.f32 %v874, %v1088
        %1090 = vmatprep.mubr.f32.mxu0 0.0
        %1091 = vmatmul.mubr.f32.gmra.mxu0 %v620
        %v1092 = vpop.f32.mrf.mxu0
        %v1093 = vadd.f32 %v878, %v1092
        %v1094 = vpop.f32.mrf.mxu0
        %v1095 = vadd.f32 %v880, %v1094
        %1096 = vmatprep.mubr.f32.mxu0 0.0
        %1097 = vmatmul.mubr.f32.gmra.mxu0 %v623
        %v1098 = vpop.f32.mrf.mxu0
        %v1099 = vadd.f32 %v884, %v1098
        %v1100 = vpop.f32.mrf.mxu0
        %v1101 = vadd.f32 %v886, %v1100
        %1102 = vmatprep.mubr.f32.mxu0 0.0
        %1103 = vmatmul.mubr.f32.gmra.mxu0 %v626
        %v1104 = vpop.f32.mrf.mxu0
        %v1105 = vadd.f32 %v890, %v1104
        %v1106 = vpop.f32.mrf.mxu0
        %v1107 = vadd.f32 %v892, %v1106
        %1108 = vmatprep.mubr.f32.mxu0 0.0
        %1109 = vmatmul.mubr.f32.gmra.mxu0 %v629
        %v1110 = vpop.f32.mrf.mxu0
        %v1111 = vadd.f32 %v896, %v1110
        %v1112 = vpop.f32.mrf.mxu0
        %v1113 = vadd.f32 %v898, %v1112
        %1114 = vmatprep.mubr.f32.mxu0 0.0
        %1115 = vmatmul.mubr.f32.gmra.mxu0 %v632
        %v1116 = vpop.f32.mrf.mxu0
        %v1117 = vadd.f32 %v902, %v1116
        %v1118 = vpop.f32.mrf.mxu0
        %v1119 = vadd.f32 %v904, %v1118
        %1120 = vmatprep.mubr.f32.mxu0 0.0
        %1121 = vmatmul.mubr.f32.gmra.mxu0 %v635
        %v1122 = vpop.f32.mrf.mxu0
        %v1123 = vadd.f32 %v908, %v1122
        %v1124 = vpop.f32.mrf.mxu0
        %v1125 = vadd.f32 %v910, %v1124
        %1126 = vmatprep.mubr.f32.mxu0 0.0
        %1127 = vmatmul.mubr.f32.gmra.mxu0 %v638
        %v1128 = vpop.f32.mrf.mxu0
        %v1129 = vadd.f32 %v914, %v1128
        %v1130 = vpop.f32.mrf.mxu0
        %v1131 = vadd.f32 %v916, %v1130
        %1132 = vmatprep.mubr.f32.mxu0 0.0
        %1133 = vmatmul.mubr.f32.gmra.mxu0 %v641
        %v1134 = vpop.f32.mrf.mxu0
        %v1135 = vadd.f32 %v920, %v1134
        %v1136 = vpop.f32.mrf.mxu0
        %v1137 = vadd.f32 %v922, %v1136
        %1138 = vmatprep.mubr.f32.mxu0 0.0
        %1139 = vmatmul.mubr.f32.gmra.mxu0 %v644
        %v1140 = vpop.f32.mrf.mxu0
        %v1141 = vadd.f32 %v926, %v1140
        %v1142 = vpop.f32.mrf.mxu0
        %v1143 = vadd.f32 %v928, %v1142
        %1144 = vmatprep.mubr.f32.mxu0 0.0
        %1145 = vmatmul.mubr.f32.gmra.mxu0 %v647
        %v1146 = vpop.f32.mrf.mxu0
        %v1147 = vadd.f32 %v932, %v1146
        %v1148 = vpop.f32.mrf.mxu0
        %v1149 = vadd.f32 %v934, %v1148
        %1150 = vmatprep.mubr.f32.mxu0 0.0
        %1151 = vmatmul.mubr.f32.gmra.mxu0 %v650
        %v1152 = vpop.f32.mrf.mxu0
        %v1153 = vadd.f32 %v938, %v1152
        %v1154 = vpop.f32.mrf.mxu0
        %v1155 = vadd.f32 %v940, %v1154
        %1156 = vmatprep.mubr.f32.mxu0 0.0
        %1157 = vmatmul.mubr.f32.gmra.mxu0 %v653
        %v1158 = vpop.f32.mrf.mxu0
        %v1159 = vadd.f32 %v944, %v1158
        %v1160 = vpop.f32.mrf.mxu0
        %v1161 = vadd.f32 %v946, %v1160
        %1162 = vmatprep.mubr.f32.mxu0 0.0
        %1163 = vmatmul.mubr.f32.gmra.mxu0 %v656
        %v1164 = vpop.f32.mrf.mxu0
        %v1165 = vadd.f32 %v950, %v1164
        %v1166 = vpop.f32.mrf.mxu0
        %v1167 = vadd.f32 %v952, %v1166
        %1168 = vmatprep.mubr.f32.mxu0 0.0
        %1169 = vmatmul.mubr.f32.gmra.mxu0 %v659
        %v1170 = vpop.f32.mrf.mxu0
        %v1171 = vadd.f32 %v956, %v1170
        %v1172 = vpop.f32.mrf.mxu0
        %v1173 = vadd.f32 %v958, %v1172
        %1174 = vmatprep.mubr.f32.mxu0 0.0
        %1175 = vmatmul.mubr.f32.gmra.mxu0 %v662
        %v1176 = vpop.f32.mrf.mxu0
        %v1177 = vadd.f32 %v962, %v1176
        %v1178 = vpop.f32.mrf.mxu0
        %v1179 = vadd.f32 %v964, %v1178
        %1180 = vmatprep.mubr.f32.mxu0 0.0
        %1181 = vmatmul.mubr.f32.gmra.mxu0 %v665
        %v1182 = vpop.f32.mrf.mxu0
        %v1183 = vadd.f32 %v968, %v1182
        %v1184 = vpop.f32.mrf.mxu0
        %v1185 = vadd.f32 %v970, %v1184
        %1186 = vmatprep.mubr.f32.mxu0 0.0
        %1187 = vmatmul.mubr.f32.gmra.mxu0 %v668
        %v1188 = vpop.f32.mrf.mxu0
        %v1189 = vadd.f32 %v974, %v1188
        %v1190 = vpop.f32.mrf.mxu0
        %v1191 = vadd.f32 %v976, %v1190
        %1192 = vmatprep.mubr.f32.mxu0 0.0
        %1193 = vmatmul.mubr.f32.gmra.mxu0 %v671
        %v1194 = vpop.f32.mrf.mxu0
        %v1195 = vadd.f32 %v980, %v1194
        %v1196 = vpop.f32.mrf.mxu0
        %v1197 = vadd.f32 %v982, %v1196
        %1198 = vdwg.mxu0
        %v1199 = vadd.f32 %v547, %v1051
        %v1200 = vadd.f32 %v548, %v1053
        %v1201 = vadd.f32 %v549, %v1057
        %v1202 = vadd.f32 %v550, %v1059
        %v1203 = vadd.f32 %v551, %v1063
        %v1204 = vadd.f32 %v552, %v1065
        %v1205 = vadd.f32 %v553, %v1069
        %v1206 = vadd.f32 %v554, %v1071
        %v1207 = vadd.f32 %v555, %v1075
        %v1208 = vadd.f32 %v556, %v1077
        %v1209 = vadd.f32 %v557, %v1081
        %v1210 = vadd.f32 %v558, %v1083
        %v1211 = vadd.f32 %v559, %v1087
        %v1212 = vadd.f32 %v560, %v1089
        %v1213 = vadd.f32 %v561, %v1093
        %v1214 = vadd.f32 %v562, %v1095
        %v1215 = vadd.f32 %v563, %v1099
        %v1216 = vadd.f32 %v564, %v1101
        %v1217 = vadd.f32 %v565, %v1105
        %v1218 = vadd.f32 %v566, %v1107
        %v1219 = vadd.f32 %v567, %v1111
        %v1220 = vadd.f32 %v568, %v1113
        %v1221 = vadd.f32 %v569, %v1117
        %v1222 = vadd.f32 %v570, %v1119
        %v1223 = vadd.f32 %v571, %v1123
        %v1224 = vadd.f32 %v572, %v1125
        %v1225 = vadd.f32 %v573, %v1129
        %v1226 = vadd.f32 %v574, %v1131
        %v1227 = vadd.f32 %v575, %v1135
        %v1228 = vadd.f32 %v576, %v1137
        %v1229 = vadd.f32 %v577, %v1141
        %v1230 = vadd.f32 %v578, %v1143
        %v1231 = vadd.f32 %v579, %v1147
        %v1232 = vadd.f32 %v580, %v1149
        %v1233 = vadd.f32 %v581, %v1153
        %v1234 = vadd.f32 %v582, %v1155
        %v1235 = vadd.f32 %v583, %v1159
        %v1236 = vadd.f32 %v584, %v1161
        %v1237 = vadd.f32 %v585, %v1165
        %v1238 = vadd.f32 %v586, %v1167
        %v1239 = vadd.f32 %v587, %v1171
        %v1240 = vadd.f32 %v588, %v1173
        %v1241 = vadd.f32 %v589, %v1177
        %v1242 = vadd.f32 %v590, %v1179
        %v1243 = vadd.f32 %v591, %v1183
        %v1244 = vadd.f32 %v592, %v1185
        %v1245 = vadd.f32 %v593, %v1189
        %v1246 = vadd.f32 %v594, %v1191
        %v1247 = vadd.f32 %v595, %v1195
        %v1248 = vadd.f32 %v596, %v1197
        %1249 = vst [vmem:[%s268] sm:$0xff] %v1199
        %1250 = vst [vmem:[%s268 + $0x8] sm:$0xff] %v1200
        %1251 = vst [vmem:[%s268 + $0x10] sm:$0xff] %v1201
        %1252 = vst [vmem:[%s268 + $0x18] sm:$0xff] %v1202
        %1253 = vst [vmem:[%s268 + $0x20] sm:$0xff] %v1203
        %1254 = vst [vmem:[%s268 + $0x28] sm:$0xff] %v1204
        %1255 = vst [vmem:[%s268 + $0x30] sm:$0xff] %v1205
        %1256 = vst [vmem:[%s268 + $0x38] sm:$0xff] %v1206
        %1257 = vst [vmem:[%s268 + $0x40] sm:$0xff] %v1207
        %1258 = vst [vmem:[%s268 + $0x48] sm:$0xff] %v1208
        %1259 = vst [vmem:[%s268 + $0x50] sm:$0xff] %v1209
        %1260 = vst [vmem:[%s268 + $0x58] sm:$0xff] %v1210
        %1261 = vst [vmem:[%s268 + $0x60] sm:$0xff] %v1211
        %1262 = vst [vmem:[%s268 + $0x68] sm:$0xff] %v1212
        %1263 = vst [vmem:[%s268 + $0x70] sm:$0xff] %v1213
        %1264 = vst [vmem:[%s268 + $0x78] sm:$0xff] %v1214
        %1265 = vst [vmem:[%s268 + $0x80] sm:$0xff] %v1215
        %1266 = vst [vmem:[%s268 + $0x88] sm:$0xff] %v1216
        %1267 = vst [vmem:[%s268 + $0x90] sm:$0xff] %v1217
        %1268 = vst [vmem:[%s268 + $0x98] sm:$0xff] %v1218
        %1269 = vst [vmem:[%s268 + $0xa0] sm:$0xff] %v1219
        %1270 = vst [vmem:[%s268 + $0xa8] sm:$0xff] %v1220
        %1271 = vst [vmem:[%s268 + $0xb0] sm:$0xff] %v1221
        %1272 = vst [vmem:[%s268 + $0xb8] sm:$0xff] %v1222
        %1273 = vst [vmem:[%s268 + $0xc0] sm:$0xff] %v1223
        %1274 = vst [vmem:[%s268 + $0xc8] sm:$0xff] %v1224
        %1275 = vst [vmem:[%s268 + $0xd0] sm:$0xff] %v1225
        %1276 = vst [vmem:[%s268 + $0xd8] sm:$0xff] %v1226
        %1277 = vst [vmem:[%s268 + $0xe0] sm:$0xff] %v1227
        %1278 = vst [vmem:[%s268 + $0xe8] sm:$0xff] %v1228
        %1279 = vst [vmem:[%s268 + $0xf0] sm:$0xff] %v1229
        %1280 = vst [vmem:[%s268 + $0xf8] sm:$0xff] %v1230
        %1281 = vst [vmem:[%s268 + $0x100] sm:$0xff] %v1231
        %1282 = vst [vmem:[%s268 + $0x108] sm:$0xff] %v1232
        %1283 = vst [vmem:[%s268 + $0x110] sm:$0xff] %v1233
        %1284 = vst [vmem:[%s268 + $0x118] sm:$0xff] %v1234
        %1285 = vst [vmem:[%s268 + $0x120] sm:$0xff] %v1235
        %1286 = vst [vmem:[%s268 + $0x128] sm:$0xff] %v1236
        %1287 = vst [vmem:[%s268 + $0x130] sm:$0xff] %v1237
        %1288 = vst [vmem:[%s268 + $0x138] sm:$0xff] %v1238
        %1289 = vst [vmem:[%s268 + $0x140] sm:$0xff] %v1239
        %1290 = vst [vmem:[%s268 + $0x148] sm:$0xff] %v1240
        %1291 = vst [vmem:[%s268 + $0x150] sm:$0xff] %v1241
        %1292 = vst [vmem:[%s268 + $0x158] sm:$0xff] %v1242
        %1293 = vst [vmem:[%s268 + $0x160] sm:$0xff] %v1243
        %1294 = vst [vmem:[%s268 + $0x168] sm:$0xff] %v1244
        %1295 = vst [vmem:[%s268 + $0x170] sm:$0xff] %v1245
        %1296 = vst [vmem:[%s268 + $0x178] sm:$0xff] %v1246
        %1297 = vst [vmem:[%s268 + $0x180] sm:$0xff] %v1247
        %1298 = vst [vmem:[%s268 + $0x188] sm:$0xff] %v1248
        // Predicated region
        $region37: #{tpu_custom_call.1} parent=31 // pred_check
          %p1299 = pneg %p322
        $region38: #{tpu_custom_call.1} parent=31 // pred_check_branch
          %1301 = sbr.rel (%p1299) target = $region40
        $region39: #{tpu_custom_call.1} parent=31 // pred_region
          %v1302 = vld [vmem:[%s268] sm:$0xff]
          %v1303 = vld [vmem:[%s268 + $0x8] sm:$0xff]
          %v1304 = vld [vmem:[%s268 + $0x10] sm:$0xff]
          %v1305 = vld [vmem:[%s268 + $0x18] sm:$0xff]
          %v1306 = vld [vmem:[%s268 + $0x20] sm:$0xff]
          %v1307 = vld [vmem:[%s268 + $0x28] sm:$0xff]
          %v1308 = vld [vmem:[%s268 + $0x30] sm:$0xff]
          %v1309 = vld [vmem:[%s268 + $0x38] sm:$0xff]
          %v1310 = vld [vmem:[%s268 + $0x40] sm:$0xff]
          %v1311 = vld [vmem:[%s268 + $0x48] sm:$0xff]
          %v1312 = vld [vmem:[%s268 + $0x50] sm:$0xff]
          %v1313 = vld [vmem:[%s268 + $0x58] sm:$0xff]
          %v1314 = vld [vmem:[%s268 + $0x60] sm:$0xff]
          %v1315 = vld [vmem:[%s268 + $0x68] sm:$0xff]
          %v1316 = vld [vmem:[%s268 + $0x70] sm:$0xff]
          %v1317 = vld [vmem:[%s268 + $0x78] sm:$0xff]
          %v1318 = vld [vmem:[%s268 + $0x80] sm:$0xff]
          %v1319 = vld [vmem:[%s268 + $0x88] sm:$0xff]
          %v1320 = vld [vmem:[%s268 + $0x90] sm:$0xff]
          %v1321 = vld [vmem:[%s268 + $0x98] sm:$0xff]
          %v1322 = vld [vmem:[%s268 + $0xa0] sm:$0xff]
          %v1323 = vld [vmem:[%s268 + $0xa8] sm:$0xff]
          %v1324 = vld [vmem:[%s268 + $0xb0] sm:$0xff]
          %v1325 = vld [vmem:[%s268 + $0xb8] sm:$0xff]
          %v1326 = vld [vmem:[%s268 + $0xc0] sm:$0xff]
          %v1327 = vld [vmem:[%s268 + $0xc8] sm:$0xff]
          %v1328 = vld [vmem:[%s268 + $0xd0] sm:$0xff]
          %v1329 = vld [vmem:[%s268 + $0xd8] sm:$0xff]
          %v1330 = vld [vmem:[%s268 + $0xe0] sm:$0xff]
          %v1331 = vld [vmem:[%s268 + $0xe8] sm:$0xff]
          %v1332 = vld [vmem:[%s268 + $0xf0] sm:$0xff]
          %v1333 = vld [vmem:[%s268 + $0xf8] sm:$0xff]
          %v1334 = vld [vmem:[%s268 + $0x100] sm:$0xff]
          %v1335 = vld [vmem:[%s268 + $0x108] sm:$0xff]
          %v1336 = vld [vmem:[%s268 + $0x110] sm:$0xff]
          %v1337 = vld [vmem:[%s268 + $0x118] sm:$0xff]
          %v1338 = vld [vmem:[%s268 + $0x120] sm:$0xff]
          %v1339 = vld [vmem:[%s268 + $0x128] sm:$0xff]
          %v1340 = vld [vmem:[%s268 + $0x130] sm:$0xff]
          %v1341 = vld [vmem:[%s268 + $0x138] sm:$0xff]
          %v1342 = vld [vmem:[%s268 + $0x140] sm:$0xff]
          %v1343 = vld [vmem:[%s268 + $0x148] sm:$0xff]
          %v1344 = vld [vmem:[%s268 + $0x150] sm:$0xff]
          %v1345 = vld [vmem:[%s268 + $0x158] sm:$0xff]
          %v1346 = vld [vmem:[%s268 + $0x160] sm:$0xff]
          %v1347 = vld [vmem:[%s268 + $0x168] sm:$0xff]
          %v1348 = vld [vmem:[%s268 + $0x170] sm:$0xff]
          %v1349 = vld [vmem:[%s268 + $0x178] sm:$0xff]
          %v1350 = vld [vmem:[%s268 + $0x180] sm:$0xff]
          %v1351 = vld [vmem:[%s268 + $0x188] sm:$0xff]
          %v1352 = vld [vmem:[%s310] sm:$0x3]
          %v1354 = vlaneseq
          %v1355 = vshrl.u32 %v1354, 7
          %v1356 = vsub.s32 0, %v1355
          %v1357 = vrot.slane %v1352, %v1356
          %v1358 = vlaneseq
          %v1359 = vshrl.u32 %v1358, 7
          %v1360 = vsub.s32 1, %v1359
          %v1361 = vrot.slane %v1352, %v1360
          %v1364 = vadd.f32 %v1302, %v1357
          %v1365 = vadd.f32 %v1303, %v1361
          %v1366 = vadd.f32 %v1304, %v1357
          %v1367 = vadd.f32 %v1305, %v1361
          %v1368 = vadd.f32 %v1306, %v1357
          %v1369 = vadd.f32 %v1307, %v1361
          %v1370 = vadd.f32 %v1308, %v1357
          %v1371 = vadd.f32 %v1309, %v1361
          %v1372 = vadd.f32 %v1310, %v1357
          %v1373 = vadd.f32 %v1311, %v1361
          %v1374 = vadd.f32 %v1312, %v1357
          %v1375 = vadd.f32 %v1313, %v1361
          %v1376 = vadd.f32 %v1314, %v1357
          %v1377 = vadd.f32 %v1315, %v1361
          %v1378 = vadd.f32 %v1316, %v1357
          %v1379 = vadd.f32 %v1317, %v1361
          %v1380 = vadd.f32 %v1318, %v1357
          %v1381 = vadd.f32 %v1319, %v1361
          %v1382 = vadd.f32 %v1320, %v1357
          %v1383 = vadd.f32 %v1321, %v1361
          %v1384 = vadd.f32 %v1322, %v1357
          %v1385 = vadd.f32 %v1323, %v1361
          %v1386 = vadd.f32 %v1324, %v1357
          %v1387 = vadd.f32 %v1325, %v1361
          %v1388 = vadd.f32 %v1326, %v1357
          %v1389 = vadd.f32 %v1327, %v1361
          %v1390 = vadd.f32 %v1328, %v1357
          %v1391 = vadd.f32 %v1329, %v1361
          %v1392 = vadd.f32 %v1330, %v1357
          %v1393 = vadd.f32 %v1331, %v1361
          %v1394 = vadd.f32 %v1332, %v1357
          %v1395 = vadd.f32 %v1333, %v1361
          %v1396 = vadd.f32 %v1334, %v1357
          %v1397 = vadd.f32 %v1335, %v1361
          %v1398 = vadd.f32 %v1336, %v1357
          %v1399 = vadd.f32 %v1337, %v1361
          %v1400 = vadd.f32 %v1338, %v1357
          %v1401 = vadd.f32 %v1339, %v1361
          %v1402 = vadd.f32 %v1340, %v1357
          %v1403 = vadd.f32 %v1341, %v1361
          %v1404 = vadd.f32 %v1342, %v1357
          %v1405 = vadd.f32 %v1343, %v1361
          %v1406 = vadd.f32 %v1344, %v1357
          %v1407 = vadd.f32 %v1345, %v1361
          %v1408 = vadd.f32 %v1346, %v1357
          %v1409 = vadd.f32 %v1347, %v1361
          %v1410 = vadd.f32 %v1348, %v1357
          %v1411 = vadd.f32 %v1349, %v1361
          %v1412 = vadd.f32 %v1350, %v1357
          %v1413 = vadd.f32 %v1351, %v1361
          %1414 = vst [vmem:[%s268] sm:$0xff] %v1364
          %1415 = vst [vmem:[%s268 + $0x8] sm:$0xff] %v1365
          %1416 = vst [vmem:[%s268 + $0x10] sm:$0xff] %v1366
          %1417 = vst [vmem:[%s268 + $0x18] sm:$0xff] %v1367
          %1418 = vst [vmem:[%s268 + $0x20] sm:$0xff] %v1368
          %1419 = vst [vmem:[%s268 + $0x28] sm:$0xff] %v1369
          %1420 = vst [vmem:[%s268 + $0x30] sm:$0xff] %v1370
          %1421 = vst [vmem:[%s268 + $0x38] sm:$0xff] %v1371
          %1422 = vst [vmem:[%s268 + $0x40] sm:$0xff] %v1372
          %1423 = vst [vmem:[%s268 + $0x48] sm:$0xff] %v1373
          %1424 = vst [vmem:[%s268 + $0x50] sm:$0xff] %v1374
          %1425 = vst [vmem:[%s268 + $0x58] sm:$0xff] %v1375
          %1426 = vst [vmem:[%s268 + $0x60] sm:$0xff] %v1376
          %1427 = vst [vmem:[%s268 + $0x68] sm:$0xff] %v1377
          %1428 = vst [vmem:[%s268 + $0x70] sm:$0xff] %v1378
          %1429 = vst [vmem:[%s268 + $0x78] sm:$0xff] %v1379
          %1430 = vst [vmem:[%s268 + $0x80] sm:$0xff] %v1380
          %1431 = vst [vmem:[%s268 + $0x88] sm:$0xff] %v1381
          %1432 = vst [vmem:[%s268 + $0x90] sm:$0xff] %v1382
          %1433 = vst [vmem:[%s268 + $0x98] sm:$0xff] %v1383
          %1434 = vst [vmem:[%s268 + $0xa0] sm:$0xff] %v1384
          %1435 = vst [vmem:[%s268 + $0xa8] sm:$0xff] %v1385
          %1436 = vst [vmem:[%s268 + $0xb0] sm:$0xff] %v1386
          %1437 = vst [vmem:[%s268 + $0xb8] sm:$0xff] %v1387
          %1438 = vst [vmem:[%s268 + $0xc0] sm:$0xff] %v1388
          %1439 = vst [vmem:[%s268 + $0xc8] sm:$0xff] %v1389
          %1440 = vst [vmem:[%s268 + $0xd0] sm:$0xff] %v1390
          %1441 = vst [vmem:[%s268 + $0xd8] sm:$0xff] %v1391
          %1442 = vst [vmem:[%s268 + $0xe0] sm:$0xff] %v1392
          %1443 = vst [vmem:[%s268 + $0xe8] sm:$0xff] %v1393
          %1444 = vst [vmem:[%s268 + $0xf0] sm:$0xff] %v1394
          %1445 = vst [vmem:[%s268 + $0xf8] sm:$0xff] %v1395
          %1446 = vst [vmem:[%s268 + $0x100] sm:$0xff] %v1396
          %1447 = vst [vmem:[%s268 + $0x108] sm:$0xff] %v1397
          %1448 = vst [vmem:[%s268 + $0x110] sm:$0xff] %v1398
          %1449 = vst [vmem:[%s268 + $0x118] sm:$0xff] %v1399
          %1450 = vst [vmem:[%s268 + $0x120] sm:$0xff] %v1400
          %1451 = vst [vmem:[%s268 + $0x128] sm:$0xff] %v1401
          %1452 = vst [vmem:[%s268 + $0x130] sm:$0xff] %v1402
          %1453 = vst [vmem:[%s268 + $0x138] sm:$0xff] %v1403
          %1454 = vst [vmem:[%s268 + $0x140] sm:$0xff] %v1404
          %1455 = vst [vmem:[%s268 + $0x148] sm:$0xff] %v1405
          %1456 = vst [vmem:[%s268 + $0x150] sm:$0xff] %v1406
          %1457 = vst [vmem:[%s268 + $0x158] sm:$0xff] %v1407
          %1458 = vst [vmem:[%s268 + $0x160] sm:$0xff] %v1408
          %1459 = vst [vmem:[%s268 + $0x168] sm:$0xff] %v1409
          %1460 = vst [vmem:[%s268 + $0x170] sm:$0xff] %v1410
          %1461 = vst [vmem:[%s268 + $0x178] sm:$0xff] %v1411
          %1462 = vst [vmem:[%s268 + $0x180] sm:$0xff] %v1412
          %1463 = vst [vmem:[%s268 + $0x188] sm:$0xff] %v1413
        $region40: #{tpu_custom_call.1} parent=31 // pred_fallthru
          _
        %s1464 = sand.u32 %s128, 1
        %s1465 = scalar_lea.sflag [#allocation3], %s1464
        %s1466 = sand.u32 %s128, 1
        %s1467 = smul.addr %s1466, 400
        %s1468 = scalar_lea.vmem [#allocation2], %s1467
        // Predicated region
        $region41: #{tpu_custom_call.1} parent=31 // pred_check
          %p1469 = pneg %p138
        $region42: #{tpu_custom_call.1} parent=31 // pred_check_branch
          %1471 = sbr.rel (%p1469) target = $region44
        $region43: #{tpu_custom_call.1} parent=31 // pred_region
          %s1472 = smul.u32 25, %s22
          %s1473 = smul.u32 2, %s23
          %s1474 = ssub.s32 3, %s1473
          %p1475 = scmp.lt.s32.totalorder %s1474, 2
          %s1476 = scalar_select %p1475, %s1474, 2
          %s1477 = smul.u32 3200, %s1476
          %s1479 = ssub.s32 6400, %s1477
          %1480 = vsyncadd %s1465, %s1479
          %p1481 = scmp.ne.s32.totalorder 0, %s1477
          %s1482 = smul.addr %s1472, 3
          %s1483 = sadd.s32 %s1473, %s1482
          %s1484 = smul.addr %s1483, 128
          %s1485 = scalar_lea.hbm %s3, %s1484
          %s1486 = smul.u32 %s1476, 8
          %s1487 = smul.u32 %s1486, 25
          %s1488 = sshll.u32 %s1468, 4
          %s1489 = int_to_ptr.vmem [resolvable:$true] %s1488
          %s1490 = sshll.u32 %s1487, 4
          %1494 = dma.vmem_to_hbm [thread:$0]  (%p1481), %s1489, %s1490, %s1485, %s1465, 256, 384, %s1486
        $region44: #{tpu_custom_call.1} parent=31 // pred_fallthru
          _
      $region32: #{tpu_custom_call.1} parent=5 // pred_fallthru
        _
      %p1495 = scmp.le.s32.totalorder 2, %s12
      // Predicated region
      $region45: #{tpu_custom_call.1} parent=5 // pred_check
        %p1496 = pneg %p1495
      $region46: #{tpu_custom_call.1} parent=5 // pred_check_branch
        %1498 = sbr.rel (%p1496) target = $region48
      $region47: #{tpu_custom_call.1} parent=5 // pred_region
        %s1499 = ssub.s32 %s12, 2
        // Predicated region
        $region49: #{tpu_custom_call.1} parent=47 // pred_check
          %p1500 = pneg %p144
        $region50: #{tpu_custom_call.1} parent=47 // pred_check_branch
          %1502 = sbr.rel (%p1500) target = $region52
        $region51: #{tpu_custom_call.1} parent=47 // pred_region
          %s1503 = sand.u32 %s129, 1
          %s1504 = scalar_lea.sflag [#allocation3], %s1503
          %s1505 = sand.u32 %s129, 1
          %s1506 = smul.addr %s1505, 400
          %s1507 = scalar_lea.vmem [#allocation2], %s1506
          %1508 = dma.done %s1504, 6400
        $region52: #{tpu_custom_call.1} parent=47 // pred_fallthru
          _
      $region48: #{tpu_custom_call.1} parent=5 // pred_fallthru
        _
    $region6: #{tpu_custom_call.1} parent=1 // loop_footer
      %s16 = sadd.s32 1, %s12
    $region7: #{tpu_custom_call.1} parent=1 // loop_footer_branch
      %11 = sbr.rel target = $region3
    $region8: #{tpu_custom_call.1} parent=1 // loop_exit
      _
    %1509 = vsyncpa [#allocation3], 1
    %s1510 = scalar_lea.sflag [#allocation3], 1
    %1511 = vsyncpa %s1510, 1

</llo_original>
